<compile_context>
chip_gen: v5e
topology: v5e:2x2
jax: 0.10.0
libtpu: 0.0.40
codegen_flags: <defaults>
</compile_context>

<pallas_src>
import functools
import math

import jax
import jax.numpy as jnp
import numpy as np
from jax.experimental import pallas as pl
from jax.experimental.pallas import tpu as pltpu


# ----------------------------- config (SMALL) -----------------------------
D_MODEL = 32
D_KV = 8
N_HEADS = 4
INNER_DIM = N_HEADS * D_KV          # 32
D_FF = 64                           # feed_forward_proj == 'relu'  (T5DenseReluDense)
NUM_BUCKETS = 32
MAX_DISTANCE = 128
IS_DECODER = False                  # encoder block: bidirectional buckets, no cross-attn
LAYER_NORM_EPS = 1e-6
DROPOUT_RATE = 0.0                  # eval mode -> dropout is a no-op
BATCH = 2
SEQ = 8


# ------------------------- relative position bias -------------------------
def _relative_position_bucket(relative_position, bidirectional=True,
                              num_buckets=32, max_distance=128):
    """Port of T5Attention._relative_position_bucket (int32)."""
    relative_buckets = jnp.zeros_like(relative_position)
    if bidirectional:
        num_buckets //= 2
        relative_buckets = relative_buckets + (relative_position > 0).astype(jnp.int32) * num_buckets
        relative_position = jnp.abs(relative_position)
    else:
        relative_position = -jnp.minimum(relative_position, jnp.zeros_like(relative_position))
    max_exact = num_buckets // 2
    is_small = relative_position < max_exact
    rel_if_large = max_exact + (
        jnp.log(jnp.maximum(relative_position, 1).astype(jnp.float32) / max_exact)
        / math.log(max_distance / max_exact)
        * (num_buckets - max_exact)
    ).astype(jnp.int32)
    rel_if_large = jnp.minimum(rel_if_large, jnp.full_like(rel_if_large, num_buckets - 1))
    relative_buckets = relative_buckets + jnp.where(is_small, relative_position, rel_if_large)
    return relative_buckets


def compute_bias(rel_bias_table, query_length, key_length):
    """T5Attention.compute_bias, gathered directly in (n_heads, q, k) layout (no transpose)."""
    context_position = jnp.arange(query_length, dtype=jnp.int32)[:, None]
    memory_position = jnp.arange(key_length, dtype=jnp.int32)[None, :]
    relative_position = memory_position - context_position
    buckets = _relative_position_bucket(
        relative_position, bidirectional=not IS_DECODER,
        num_buckets=NUM_BUCKETS, max_distance=MAX_DISTANCE)
    # rel_bias_table is (num_buckets, n_heads); gather from its transpose -> (H, q, k).
    return rel_bias_table.T[:, buckets].astype(jnp.float32)


# ------------------------------ Pallas kernel ------------------------------
def t5_block_kernel(x_ref, ln1_ref, wqkv_ref, wo_ref, bias_ref,
                    ln2_ref, wi_ref, wo2_ref, out_ref,
                    *, seq, n_heads, d_kv, eps):
    """Fused T5Block for ONE sequence (one grid step over the 'parallel' batch axis).

    x_ref:    (S, d_model)       residual stream for this sequence (f32)
    ln1_ref:  (1, d_model)       T5LayerNorm weight (self-attn layer, f32)
    wqkv_ref: (d_model, 3*inner) fused [Wq^T | Wk^T | Wv^T]  (compute dtype)
    wo_ref:   (inner, d_model)   (compute dtype)
    bias_ref: (n_heads, S, S)    relative position bias (f32)
    ln2_ref:  (1, d_model)       T5LayerNorm weight (FF layer, f32)
    wi_ref:   (d_model, d_ff)    (compute dtype)
    wo2_ref:  (d_ff, d_model)    (compute dtype)
    out_ref:  (S, d_model)
    """
    inner = n_heads * d_kv
    cdt = wqkv_ref.dtype                 # MXU operand dtype; accumulation stays f32

    x = x_ref[...].astype(jnp.float32)   # (S, Dm)

    # ---- T5LayerNorm #1 (RMS: no mean subtraction, no bias) — f32 ----
    var = jnp.mean(x * x, axis=-1, keepdims=True)
    xn = (x * jax.lax.rsqrt(var + eps)) * ln1_ref[...]

    # ---- fused Q/K/V projection: one (S, Dm) @ (Dm, 3*inner) MXU matmul ----
    qkv = jnp.dot(xn.astype(cdt), wqkv_ref[...],
                  preferred_element_type=jnp.float32)            # (S, 3*inner) f32

    def heads(z):                                                # (S, inner) -> (H, S, d_kv)
        return jnp.transpose(z.reshape(seq, n_heads, d_kv), (1, 0, 2))

    q = heads(qkv[:, :inner])
    k = heads(qkv[:, inner:2 * inner])
    v = heads(qkv[:, 2 * inner:])

    # ---- attention (T5: no 1/sqrt(d_kv) scaling): head-batched dot_generals ----
    s = jnp.einsum('hqd,hkd->hqk', q.astype(cdt), k.astype(cdt),
                   preferred_element_type=jnp.float32)           # (H, S, S) f32
    s = s + bias_ref[...]                                        # + position bias
    s = s - jnp.max(s, axis=-1, keepdims=True)
    e = jnp.exp(s)
    p = e / jnp.sum(e, axis=-1, keepdims=True)                   # exact softmax (f32)
    ctx = jnp.einsum('hqk,hkd->hqd', p.astype(cdt), v.astype(cdt),
                     preferred_element_type=jnp.float32)         # (H, S, d_kv)

    # ---- "unshape" + output projection + residual (dropout p=0, eval) ----
    ctx = jnp.transpose(ctx, (1, 0, 2)).reshape(seq, inner)      # (S, inner)
    h1 = x + jnp.dot(ctx.astype(cdt), wo_ref[...], preferred_element_type=jnp.float32)

    # ---- T5LayerNorm #2 + DenseReluDense + residual ----
    var2 = jnp.mean(h1 * h1, axis=-1, keepdims=True)
    h1n = (h1 * jax.lax.rsqrt(var2 + eps)) * ln2_ref[...]
    ff = jnp.dot(h1n.astype(cdt), wi_ref[...], preferred_element_type=jnp.float32)
    ff = jnp.maximum(ff, 0.0)                                    # relu (f32)
    ff = jnp.dot(ff.astype(cdt), wo2_ref[...], preferred_element_type=jnp.float32)
    out_ref[...] = (h1 + ff).astype(out_ref.dtype)


# ------------------------------- wrapper -----------------------------------
def prepare_t5_block_params(ln1_w, wq_t, wk_t, wv_t, wo_t, rel_bias_table,
                            ln2_w, wi_t, wo_ff_t, seq_len,
                            compute_dtype=jnp.bfloat16):
    """Hoisted, call-invariant prep: fuse Wq/Wk/Wv, cast weights to the MXU compute dtype,
    and build the relative-position bias once (integer glue stays in plain JAX)."""
    wqkv_t = jnp.concatenate([wq_t, wk_t, wv_t], axis=1).astype(compute_dtype)
    position_bias = compute_bias(rel_bias_table, seq_len, seq_len)        # (H, S, S) f32
    return dict(
        ln1=ln1_w.reshape(1, -1).astype(jnp.float32),
        wqkv=wqkv_t,
        wo=wo_t.astype(compute_dtype),
        bias=position_bias,
        ln2=ln2_w.reshape(1, -1).astype(jnp.float32),
        wi=wi_t.astype(compute_dtype),
        wo_ff=wo_ff_t.astype(compute_dtype),
    )


def t5_block_forward(hidden_states, params):
    B, S, Dm = hidden_states.shape
    H = N_HEADS
    inner = params["wo"].shape[0]
    Dff = params["wi"].shape[1]
    T = B * S

    x2d = hidden_states.reshape(T, Dm).astype(jnp.float32)

    kernel = functools.partial(t5_block_kernel, seq=S, n_heads=H,
                               d_kv=inner // H, eps=LAYER_NORM_EPS)

    out2d = pl.pallas_call(
        kernel,
        out_shape=jax.ShapeDtypeStruct((T, Dm), hidden_states.dtype),
        grid_spec=pltpu.PrefetchScalarGridSpec(
            num_scalar_prefetch=0,
            grid=(B,),                                            # per-sequence, parallel
            in_specs=[
                pl.BlockSpec((S, Dm), lambda b: (b, 0)),          # this sequence's tokens
                pl.BlockSpec((1, Dm), lambda b: (0, 0)),          # ln1 weight (resident)
                pl.BlockSpec((Dm, 3 * inner), lambda b: (0, 0)),  # fused Wqkv^T (resident)
                pl.BlockSpec((inner, Dm), lambda b: (0, 0)),      # Wo^T (resident)
                pl.BlockSpec((H, S, S), lambda b: (0, 0, 0)),     # position bias (resident)
                pl.BlockSpec((1, Dm), lambda b: (0, 0)),          # ln2 weight (resident)
                pl.BlockSpec((Dm, Dff), lambda b: (0, 0)),        # Wi^T (resident)
                pl.BlockSpec((Dff, Dm), lambda b: (0, 0)),        # Wo_ff^T (resident)
            ],
            out_specs=pl.BlockSpec((S, Dm), lambda b: (b, 0)),
        ),
        compiler_params=pltpu.CompilerParams(
            dimension_semantics=("parallel",),        # shard sequences across TensorCores
            vmem_limit_bytes=48 * 1024 * 1024),       # explicit budget (v7x: 64 MiB physical)
        # TODO(synk): out last dim (32 here) < 128 lanes -> masked stores at toy size;
        #             real T5 d_model (512/768) is already lane-dense.
    )(x2d, params["ln1"], params["wqkv"], params["wo"], params["bias"],
      params["ln2"], params["wi"], params["wo_ff"])

    hidden_out = out2d.reshape(B, S, Dm)
    # Mirror the PyTorch T5Block return (use_cache=False, output_attentions=False):
    # (hidden_states, position_bias); HF keeps a leading batch-1 dim on the bias.
    return hidden_out, params["bias"][None]


# ------------------------------ JAX reference ------------------------------
def t5_block_ref(hidden, ln1_w, wq_t, wk_t, wv_t, wo_t, position_bias,
                 ln2_w, wi_t, wo_ff_t, compute_dtype=jnp.float32):
    """Mirror of the PyTorch module; with compute_dtype=f32 it is the exact fp32 math,
    with bf16 it applies the identical mixed-precision casts as the kernel."""
    B, S, Dm = hidden.shape
    cdt = compute_dtype

    def t5_ln(x, w):
        var = jnp.mean(x.astype(jnp.float32) ** 2, axis=-1, keepdims=True)
        return w * (x * jax.lax.rsqrt(var + LAYER_NORM_EPS))

    def mm(a, b):
        return jnp.dot(a.astype(cdt), b.astype(cdt), preferred_element_type=jnp.float32)

    # self-attention sub-layer
    xn = t5_ln(hidden, ln1_w)
    q, k, v = mm(xn, wq_t), mm(xn, wk_t), mm(xn, wv_t)

    def split(z):  # (B,S,inner) -> (B,H,S,dk)
        return jnp.transpose(z.reshape(B, S, N_HEADS, D_KV), (0, 2, 1, 3))

    qh, kh, vh = split(q), split(k), split(v)
    scores = jnp.einsum('bhqd,bhkd->bhqk', qh.astype(cdt), kh.astype(cdt),
                        preferred_element_type=jnp.float32) + position_bias[None]
    scores = scores - jnp.max(scores, axis=-1, keepdims=True)
    e = jnp.exp(scores)
    p = e / jnp.sum(e, axis=-1, keepdims=True)
    ctx = jnp.einsum('bhqk,bhkd->bhqd', p.astype(cdt), vh.astype(cdt),
                     preferred_element_type=jnp.float32)
    ctx = jnp.transpose(ctx, (0, 2, 1, 3)).reshape(B, S, INNER_DIM)
    h1 = hidden + mm(ctx, wo_t)

    # feed-forward sub-layer (relu)
    h1n = t5_ln(h1, ln2_w)
    ff = jnp.maximum(mm(h1n, wi_t), 0.0)
    ff = mm(ff, wo_ff_t)
    return h1 + ff


# ----------------------------------- main -----------------------------------
if __name__ == "__main__":
    key = jax.random.PRNGKey(0)
    k_hs, k_q, k_k, k_v, k_o, k_b, k_l1, k_l2, k_wi, k_wo2 = jax.random.split(key, 10)

    hidden_states = jax.random.normal(k_hs, (BATCH, SEQ, D_MODEL), dtype=jnp.float32)

    # Deterministic parameters (nn.Linear weights are (out,in); stored pre-transposed (in,out)).
    scale_m = 1.0 / math.sqrt(D_MODEL)
    scale_f = 1.0 / math.sqrt(D_FF)
    wq_t = jax.random.normal(k_q, (D_MODEL, INNER_DIM), dtype=jnp.float32) * scale_m
    wk_t = jax.random.normal(k_k, (D_MODEL, INNER_DIM), dtype=jnp.float32) * scale_m
    wv_t = jax.random.normal(k_v, (D_MODEL, INNER_DIM), dtype=jnp.float32) * scale_m
    wo_t = jax.random.normal(k_o, (INNER_DIM, D_MODEL), dtype=jnp.float32) * scale_m
    wi_t = jax.random.normal(k_wi, (D_MODEL, D_FF), dtype=jnp.float32) * scale_m
    wo_ff_t = jax.random.normal(k_wo2, (D_FF, D_MODEL), dtype=jnp.float32) * scale_f
    rel_bias_table = jax.random.normal(k_b, (NUM_BUCKETS, N_HEADS), dtype=jnp.float32) * 0.1
    ln1_w = 1.0 + 0.1 * jax.random.normal(k_l1, (D_MODEL,), dtype=jnp.float32)
    ln2_w = 1.0 + 0.1 * jax.random.normal(k_l2, (D_MODEL,), dtype=jnp.float32)

    position_bias = compute_bias(rel_bias_table, SEQ, SEQ)

    # ---- check 1: full-f32 path == the PyTorch fp32 module (exact softmax, exact recip) ----
    params_f32 = prepare_t5_block_params(ln1_w, wq_t, wk_t, wv_t, wo_t, rel_bias_table,
                                         ln2_w, wi_t, wo_ff_t, SEQ,
                                         compute_dtype=jnp.float32)
    out_f32, pbias_out = t5_block_forward(hidden_states, params_f32)
    out_f32 = jax.block_until_ready(out_f32)
    ref_f32 = t5_block_ref(hidden_states, ln1_w, wq_t, wk_t, wv_t, wo_t, position_bias,
                           ln2_w, wi_t, wo_ff_t, compute_dtype=jnp.float32)
    np.testing.assert_allclose(np.asarray(out_f32), np.asarray(ref_f32),
                               rtol=1e-3, atol=1e-3)   # only accumulation-order differences
    np.testing.assert_allclose(np.asarray(pbias_out[0]), np.asarray(position_bias),
                               rtol=1e-6, atol=1e-6)

    # ---- check 2: production bf16-operand / f32-accumulate path vs the same-cast reference ----
    params_bf16 = prepare_t5_block_params(ln1_w, wq_t, wk_t, wv_t, wo_t, rel_bias_table,
                                          ln2_w, wi_t, wo_ff_t, SEQ,
                                          compute_dtype=jnp.bfloat16)
    out_bf16, _ = t5_block_forward(hidden_states, params_bf16)
    out_bf16 = jax.block_until_ready(out_bf16)
    ref_bf16 = t5_block_ref(hidden_states, ln1_w, wq_t, wk_t, wv_t, wo_t, position_bias,
                            ln2_w, wi_t, wo_ff_t, compute_dtype=jnp.bfloat16)
    np.testing.assert_allclose(np.asarray(out_bf16), np.asarray(ref_bf16),
                               rtol=2e-2, atol=2e-2)

    print("KERNEL_OK")
</pallas_src>

<mosaic_0001>
module attributes {stable_mosaic.version = 11 : i64} {
  func.func @t5_block_kernel(%arg0: i32, %arg1: memref<8x32xf32, #tpu.memory_space<vmem>>, %arg2: memref<1x32xf32, #tpu.memory_space<vmem>>, %arg3: memref<32x96xf32, #tpu.memory_space<vmem>>, %arg4: memref<32x32xf32, #tpu.memory_space<vmem>>, %arg5: memref<4x8x8xf32, #tpu.memory_space<vmem>>, %arg6: memref<1x32xf32, #tpu.memory_space<vmem>>, %arg7: memref<32x64xf32, #tpu.memory_space<vmem>>, %arg8: memref<64x32xf32, #tpu.memory_space<vmem>>, %arg9: memref<8x32xf32, #tpu.memory_space<vmem>>) attributes {dimension_semantics = [#tpu.dimension_semantics<parallel>], iteration_bounds = array<i64: 2>, scalar_prefetch = 0 : i64, scratch_operands = 0 : i64, tpu.core_type = #tpu.core_type<tc>, window_params = [{transform_indices = @transform_0, window_bounds = array<i64: 8, 32>}, {pipeline_mode = #tpu.pipeline_mode<synchronous>, transform_indices = @transform_1, window_bounds = array<i64: 1, 32>}, {pipeline_mode = #tpu.pipeline_mode<synchronous>, transform_indices = @transform_2, window_bounds = array<i64: 32, 96>}, {pipeline_mode = #tpu.pipeline_mode<synchronous>, transform_indices = @transform_3, window_bounds = array<i64: 32, 32>}, {pipeline_mode = #tpu.pipeline_mode<synchronous>, transform_indices = @transform_4, window_bounds = array<i64: 4, 8, 8>}, {pipeline_mode = #tpu.pipeline_mode<synchronous>, transform_indices = @transform_5, window_bounds = array<i64: 1, 32>}, {pipeline_mode = #tpu.pipeline_mode<synchronous>, transform_indices = @transform_6, window_bounds = array<i64: 32, 64>}, {pipeline_mode = #tpu.pipeline_mode<synchronous>, transform_indices = @transform_7, window_bounds = array<i64: 64, 32>}, {transform_indices = @transform_8, window_bounds = array<i64: 8, 32>}]} {
    %c0 = arith.constant 0 : index
    %c0_0 = arith.constant 0 : index
    %0 = vector.load %arg1[%c0, %c0_0] : memref<8x32xf32, #tpu.memory_space<vmem>>, vector<8x32xf32>
    %1 = arith.mulf %0, %0 : vector<8x32xf32>
    %cst = arith.constant dense<0.000000e+00> : vector<8xf32>
    %2 = vector.multi_reduction <add>, %1, %cst [1] : vector<8x32xf32> to vector<8xf32>
    %3 = vector.shape_cast %2 : vector<8xf32> to vector<8x1xf32>
    %cst_1 = arith.constant 3.200000e+01 : f32
    %4 = vector.broadcast %cst_1 : f32 to vector<8x1xf32>
    %5 = arith.divf %3, %4 : vector<8x1xf32>
    %cst_2 = arith.constant 9.99999997E-7 : f32
    %6 = vector.broadcast %cst_2 : f32 to vector<8x1xf32>
    %7 = arith.addf %5, %6 : vector<8x1xf32>
    %8 = math.rsqrt %7 : vector<8x1xf32>
    %9 = vector.broadcast %8 : vector<8x1xf32> to vector<8x32xf32>
    %10 = arith.mulf %0, %9 : vector<8x32xf32>
    %c0_3 = arith.constant 0 : index
    %c0_4 = arith.constant 0 : index
    %11 = vector.load %arg2[%c0_3, %c0_4] : memref<1x32xf32, #tpu.memory_space<vmem>>, vector<1x32xf32>
    %12 = vector.broadcast %11 : vector<1x32xf32> to vector<8x32xf32>
    %13 = arith.mulf %10, %12 : vector<8x32xf32>
    %c0_5 = arith.constant 0 : index
    %c0_6 = arith.constant 0 : index
    %14 = vector.load %arg3[%c0_5, %c0_6] : memref<32x96xf32, #tpu.memory_space<vmem>>, vector<32x96xf32>
    %cst_7 = arith.constant dense<0.000000e+00> : vector<8x96xf32>
    %15 = tpu.matmul %13, %14, %cst_7 {dimension_numbers = #tpu.dot_dimension_numbers<[1], [0], [0], [1], [0, 0, 1, 1], [], []>} : vector<8x32xf32>, vector<32x96xf32>, vector<8x96xf32> -> vector<8x96xf32>
    %16 = vector.extract_strided_slice %15 {offsets = [0, 0], sizes = [8, 32], strides = [1, 1]} : vector<8x96xf32> to vector<8x32xf32>
    %17 = vector.shape_cast %16 : vector<8x32xf32> to vector<8x4x8xf32>
    %18 = tpu.transpose %17, [1, 0, 2] : vector<8x4x8xf32> -> vector<4x8x8xf32>
    %19 = vector.extract_strided_slice %15 {offsets = [0, 32], sizes = [8, 32], strides = [1, 1]} : vector<8x96xf32> to vector<8x32xf32>
    %20 = vector.shape_cast %19 : vector<8x32xf32> to vector<8x4x8xf32>
    %21 = tpu.transpose %20, [1, 0, 2] : vector<8x4x8xf32> -> vector<4x8x8xf32>
    %22 = vector.extract_strided_slice %15 {offsets = [0, 64], sizes = [8, 32], strides = [1, 1]} : vector<8x96xf32> to vector<8x32xf32>
    %23 = vector.shape_cast %22 : vector<8x32xf32> to vector<8x4x8xf32>
    %24 = tpu.transpose %23, [1, 0, 2] : vector<8x4x8xf32> -> vector<4x8x8xf32>
    "tpu.trace_start"() <{level = 10 : i32, message = "hqd,hkd->hqk"}> : () -> ()
    %cst_8 = arith.constant dense<0.000000e+00> : vector<4x8x8xf32>
    %25 = tpu.matmul %18, %21, %cst_8 {dimension_numbers = #tpu.dot_dimension_numbers<[2], [2], [1], [1], [0, 0, 0, 1, 1, 1], [0], [0]>} : vector<4x8x8xf32>, vector<4x8x8xf32>, vector<4x8x8xf32> -> vector<4x8x8xf32>
    "tpu.trace_stop"() : () -> ()
    %c0_9 = arith.constant 0 : index
    %c0_10 = arith.constant 0 : index
    %c0_11 = arith.constant 0 : index
    %26 = vector.load %arg5[%c0_9, %c0_10, %c0_11] : memref<4x8x8xf32, #tpu.memory_space<vmem>>, vector<4x8x8xf32>
    %27 = arith.addf %25, %26 : vector<4x8x8xf32>
    %cst_12 = arith.constant dense<0xFF800000> : vector<4x8xf32>
    %28 = vector.multi_reduction <maximumf>, %27, %cst_12 [2] : vector<4x8x8xf32> to vector<4x8xf32>
    %29 = vector.shape_cast %28 : vector<4x8xf32> to vector<4x8x1xf32>
    %30 = vector.broadcast %29 : vector<4x8x1xf32> to vector<4x8x8xf32>
    %31 = arith.subf %27, %30 : vector<4x8x8xf32>
    %32 = math.exp %31 : vector<4x8x8xf32>
    %cst_13 = arith.constant dense<0.000000e+00> : vector<4x8xf32>
    %33 = vector.multi_reduction <add>, %32, %cst_13 [2] : vector<4x8x8xf32> to vector<4x8xf32>
    %34 = vector.shape_cast %33 : vector<4x8xf32> to vector<4x8x1xf32>
    %35 = vector.broadcast %34 : vector<4x8x1xf32> to vector<4x8x8xf32>
    %36 = arith.divf %32, %35 : vector<4x8x8xf32>
    "tpu.trace_start"() <{level = 10 : i32, message = "hqk,hkd->hqd"}> : () -> ()
    %cst_14 = arith.constant dense<0.000000e+00> : vector<4x8x8xf32>
    %37 = tpu.matmul %36, %24, %cst_14 {dimension_numbers = #tpu.dot_dimension_numbers<[2], [1], [1], [2], [0, 0, 0, 1, 1, 2], [0], [0]>} : vector<4x8x8xf32>, vector<4x8x8xf32>, vector<4x8x8xf32> -> vector<4x8x8xf32>
    "tpu.trace_stop"() : () -> ()
    %38 = tpu.transpose %37, [1, 0, 2] : vector<4x8x8xf32> -> vector<8x4x8xf32>
    %39 = vector.shape_cast %38 : vector<8x4x8xf32> to vector<8x32xf32>
    %c0_15 = arith.constant 0 : index
    %c0_16 = arith.constant 0 : index
    %40 = vector.load %arg4[%c0_15, %c0_16] : memref<32x32xf32, #tpu.memory_space<vmem>>, vector<32x32xf32>
    %cst_17 = arith.constant dense<0.000000e+00> : vector<8x32xf32>
    %41 = tpu.matmul %39, %40, %cst_17 {dimension_numbers = #tpu.dot_dimension_numbers<[1], [0], [0], [1], [0, 0, 1, 1], [], []>} : vector<8x32xf32>, vector<32x32xf32>, vector<8x32xf32> -> vector<8x32xf32>
    %42 = arith.addf %0, %41 : vector<8x32xf32>
    %43 = arith.mulf %42, %42 : vector<8x32xf32>
    %cst_18 = arith.constant dense<0.000000e+00> : vector<8xf32>
    %44 = vector.multi_reduction <add>, %43, %cst_18 [1] : vector<8x32xf32> to vector<8xf32>
    %45 = vector.shape_cast %44 : vector<8xf32> to vector<8x1xf32>
    %cst_19 = arith.constant 3.200000e+01 : f32
    %46 = vector.broadcast %cst_19 : f32 to vector<8x1xf32>
    %47 = arith.divf %45, %46 : vector<8x1xf32>
    %cst_20 = arith.constant 9.99999997E-7 : f32
    %48 = vector.broadcast %cst_20 : f32 to vector<8x1xf32>
    %49 = arith.addf %47, %48 : vector<8x1xf32>
    %50 = math.rsqrt %49 : vector<8x1xf32>
    %51 = vector.broadcast %50 : vector<8x1xf32> to vector<8x32xf32>
    %52 = arith.mulf %42, %51 : vector<8x32xf32>
    %c0_21 = arith.constant 0 : index
    %c0_22 = arith.constant 0 : index
    %53 = vector.load %arg6[%c0_21, %c0_22] : memref<1x32xf32, #tpu.memory_space<vmem>>, vector<1x32xf32>
    %54 = vector.broadcast %53 : vector<1x32xf32> to vector<8x32xf32>
    %55 = arith.mulf %52, %54 : vector<8x32xf32>
    %c0_23 = arith.constant 0 : index
    %c0_24 = arith.constant 0 : index
    %56 = vector.load %arg7[%c0_23, %c0_24] : memref<32x64xf32, #tpu.memory_space<vmem>>, vector<32x64xf32>
    %cst_25 = arith.constant dense<0.000000e+00> : vector<8x64xf32>
    %57 = tpu.matmul %55, %56, %cst_25 {dimension_numbers = #tpu.dot_dimension_numbers<[1], [0], [0], [1], [0, 0, 1, 1], [], []>} : vector<8x32xf32>, vector<32x64xf32>, vector<8x64xf32> -> vector<8x64xf32>
    %cst_26 = arith.constant 0.000000e+00 : f32
    %58 = vector.broadcast %cst_26 : f32 to vector<8x64xf32>
    %59 = arith.maximumf %57, %58 : vector<8x64xf32>
    %c0_27 = arith.constant 0 : index
    %c0_28 = arith.constant 0 : index
    %60 = vector.load %arg8[%c0_27, %c0_28] : memref<64x32xf32, #tpu.memory_space<vmem>>, vector<64x32xf32>
    %cst_29 = arith.constant dense<0.000000e+00> : vector<8x32xf32>
    %61 = tpu.matmul %59, %60, %cst_29 {dimension_numbers = #tpu.dot_dimension_numbers<[1], [0], [0], [1], [0, 0, 1, 1], [], []>} : vector<8x64xf32>, vector<64x32xf32>, vector<8x32xf32> -> vector<8x32xf32>
    %62 = arith.addf %42, %61 : vector<8x32xf32>
    %c0_30 = arith.constant 0 : index
    %c0_31 = arith.constant 0 : index
    %63 = vector.load %arg9[%c0_30, %c0_31] : memref<8x32xf32, #tpu.memory_space<vmem>>, vector<8x32xf32>
    tpu.vector_store %arg9[%c0_30, %c0_31], %62 {strides = array<i32>} : memref<8x32xf32, #tpu.memory_space<vmem>>, vector<8x32xf32>,
    return
  }
  func.func @transform_0(%arg0: i32) -> (i32, i32) {
    %c0_i32 = arith.constant 0 : i32
    %c0_i32_0 = arith.constant 0 : i32
    return %arg0, %c0_i32 : i32, i32
  }
  func.func @transform_1(%arg0: i32) -> (i32, i32) {
    %c0_i32 = arith.constant 0 : i32
    %c0_i32_0 = arith.constant 0 : i32
    %c0_i32_1 = arith.constant 0 : i32
    return %c0_i32, %c0_i32_0 : i32, i32
  }
  func.func @transform_2(%arg0: i32) -> (i32, i32) {
    %c0_i32 = arith.constant 0 : i32
    %c0_i32_0 = arith.constant 0 : i32
    %c0_i32_1 = arith.constant 0 : i32
    return %c0_i32, %c0_i32_0 : i32, i32
  }
  func.func @transform_3(%arg0: i32) -> (i32, i32) {
    %c0_i32 = arith.constant 0 : i32
    %c0_i32_0 = arith.constant 0 : i32
    %c0_i32_1 = arith.constant 0 : i32
    return %c0_i32, %c0_i32_0 : i32, i32
  }
  func.func @transform_4(%arg0: i32) -> (i32, i32, i32) {
    %c0_i32 = arith.constant 0 : i32
    %c0_i32_0 = arith.constant 0 : i32
    %c0_i32_1 = arith.constant 0 : i32
    %c0_i32_2 = arith.constant 0 : i32
    return %c0_i32, %c0_i32_0, %c0_i32_1 : i32, i32, i32
  }
  func.func @transform_5(%arg0: i32) -> (i32, i32) {
    %c0_i32 = arith.constant 0 : i32
    %c0_i32_0 = arith.constant 0 : i32
    %c0_i32_1 = arith.constant 0 : i32
    return %c0_i32, %c0_i32_0 : i32, i32
  }
  func.func @transform_6(%arg0: i32) -> (i32, i32) {
    %c0_i32 = arith.constant 0 : i32
    %c0_i32_0 = arith.constant 0 : i32
    %c0_i32_1 = arith.constant 0 : i32
    return %c0_i32, %c0_i32_0 : i32, i32
  }
  func.func @transform_7(%arg0: i32) -> (i32, i32) {
    %c0_i32 = arith.constant 0 : i32
    %c0_i32_0 = arith.constant 0 : i32
    %c0_i32_1 = arith.constant 0 : i32
    return %c0_i32, %c0_i32_0 : i32, i32
  }
  func.func @transform_8(%arg0: i32) -> (i32, i32) {
    %c0_i32 = arith.constant 0 : i32
    %c0_i32_0 = arith.constant 0 : i32
    return %arg0, %c0_i32 : i32, i32
  }
}

</mosaic_0001>

<llo_original>
// kernel: tpu_custom_call.1
$region0: #{tpu_custom_call.1}
  #allocation0 [shape = 'u32[]', space=smem, size = 0x4, offset = 0x4, fixed_abs, tag = 'smem constant byte address 0x4 - core index']
  #allocation1 [shape = 'u32[72,128]{1,0:T(1,128)}', space=vmem, size = 0x9000, scoped, tag = 'internal scratch']
  %s0 = inlined_call_operand.hbm [shape: f32[16,32], index: 0, kind: input, shape index: {}]
  %s1 = inlined_call_operand.hbm [shape: f32[1,32], index: 1, kind: input, shape index: {}]
  %s2 = inlined_call_operand.vmem [shape: f32[32,96], index: 2, kind: input, shape index: {}]
  %s3 = inlined_call_operand.vmem [shape: f32[32,32], index: 3, kind: input, shape index: {}]
  %s4 = inlined_call_operand.vmem [shape: f32[4,8,8], index: 4, kind: input, shape index: {}]
  %s5 = inlined_call_operand.vmem [shape: f32[1,32], index: 5, kind: input, shape index: {}]
  %s6 = inlined_call_operand.hbm [shape: f32[32,64], index: 6, kind: input, shape index: {}]
  %s7 = inlined_call_operand.vmem [shape: f32[64,32], index: 7, kind: input, shape index: {}]
  %s8 = inlined_call_operand.hbm [shape: f32[16,32], index: 8, kind: output, shape index: {}]
  %s9 = sld [smem:[#allocation0]]
  $region77: #{tpu_custom_call.1} parent=0
    _
  %s11 = ssub.s32 1, %s9
  %s12 = scalar_select 0, %s11, %s9
  $region1: #{tpu_custom_call.1} parent=0
    #allocation2 [shape = 'u8[8192]{0}', space=vmem, size = 0x2000, scoped, tag = 'input window, operand 0']
    #allocation3 [shape = 's32[2]{0}', space=sflag, size = 0x8, scoped, tag = 'scoped memory for tpu_custom_call.1']
    #allocation4 [shape = 's32[2]{0}', space=sflag, size = 0x8, scoped, tag = 'scoped memory for tpu_custom_call.1']
    #allocation5 [shape = 'u8[512]{0}', space=vmem, size = 0x400, scoped, tag = 'input window, operand 1, single buffered']
    #allocation6 [shape = 's32[1]{0}', space=sflag, size = 0x4, scoped, tag = 'scoped memory for tpu_custom_call.1']
    #allocation7 [shape = 'u8[16384]{0}', space=vmem, size = 0x4000, scoped, tag = 'input window, operand 6, single buffered']
    #allocation8 [shape = 'u8[8192]{0}', space=vmem, size = 0x2000, scoped, tag = 'output window, operand 0']
    %13 = vsyncpa [#allocation3], 0
    %s14 = scalar_lea.sflag [#allocation3], 1
    %15 = vsyncpa %s14, 0
    %16 = vsyncpa [#allocation6], 0
    %17 = vsyncpa [#allocation4], 0
    %s18 = scalar_lea.sflag [#allocation4], 1
    %19 = vsyncpa %s18, 0
    loop: start=0, step=1, limit=4
    $region2: #{tpu_custom_call.1} parent=1 // loop_pre_header
      _
    $region3: #{tpu_custom_call.1} parent=1 // loop_header
      %s21 = sphi 0, %s25
      %p22 = scmp.ge.s32.totalorder %s21, 4
      %s31 = sphi 0, %s33
      %s34 = sphi 0, %s31
      %s35 = sphi 0, %s34
      %s51 = sphi 0, %s35
      %s55 = sphi 0, %s55
      %s57 = sphi 0, %s55
      %s58 = sphi 0, %s57
      %s72 = sphi 0, %s58
      %s76 = sphi 0, %s76
      %s78 = sphi 0, %s76
      %s79 = sphi 0, %s78
      %s93 = sphi 0, %s79
      %s97 = sphi 0, %s97
      %s99 = sphi 0, %s97
      %s100 = sphi 0, %s99
      %s114 = sphi 0, %s100
      %s118 = sphi 0, %s118
      %s120 = sphi 0, %s118
      %s121 = sphi 0, %s120
      %s135 = sphi 0, %s121
      %s139 = sphi 0, %s139
      %s141 = sphi 0, %s139
      %s142 = sphi 0, %s141
      %s156 = sphi 0, %s142
      %s160 = sphi 0, %s160
      %s162 = sphi 0, %s160
      %s163 = sphi 0, %s162
      %s177 = sphi 0, %s163
      %s181 = sphi 0, %s181
      %s183 = sphi 0, %s181
      %s184 = sphi 0, %s183
      %s198 = sphi 0, %s184
      %s204 = sphi 0, %s206
      %s207 = sphi 0, %s204
      %s208 = sphi 0, %s207
      %s224 = sphi 0, %s208
    $region4: #{tpu_custom_call.1} parent=1 // loop_header_branch
      %24 = sbr.rel (%p22) target = $region8
    $region5: #{tpu_custom_call.1} parent=1 // loop_body
      %s26 = ssub.s32 %s21, 1
      %s27 = ssub.s32 %s21, 2
      %s28 = sadd.s32 %s21, 1
      %s29 = ssub.s32 %s21, %s28
      %p30 = scmp.eq.s32.totalorder %s29, 0
      %s32 = sadd.s32 %s31, 1
      %s33 = scalar_select %p30, %s31, %s32
      %p36 = pneg %p30
      %p37 = scmp.eq.s32.totalorder %s21, 1
      %p38 = por %p36, %p37
      %p39 = scmp.ne.s32.totalorder %s31, %s34
      %p40 = scmp.eq.s32.totalorder %s21, 0
      %p41 = por %p39, %p40
      %p42 = scmp.ne.s32.totalorder %s31, %s34
      %p43 = scmp.eq.s32.totalorder %s26, 1
      %p44 = por %p42, %p43
      %p45 = scmp.ne.s32.totalorder %s34, %s35
      %p46 = scmp.eq.s32.totalorder %s26, 0
      %p47 = por %p45, %p46
      %p48 = scmp.ne.s32.totalorder %s34, %s35
      %p49 = scmp.eq.s32.totalorder %s27, 1
      %p50 = por %p48, %p49
      %p52 = scmp.ne.s32.totalorder %s35, %s51
      %p53 = scmp.eq.s32.totalorder %s27, 0
      %p54 = por %p52, %p53
      %s56 = sadd.s32 %s55, 1
      %p59 = scmp.eq.s32.totalorder %s21, 1
      %p60 = scmp.ne.s32.totalorder %s55, %s57
      %p61 = scmp.eq.s32.totalorder %s21, 0
      %p62 = por %p60, %p61
      %p63 = scmp.ne.s32.totalorder %s55, %s57
      %p64 = scmp.eq.s32.totalorder %s26, 1
      %p65 = por %p63, %p64
      %p66 = scmp.ne.s32.totalorder %s57, %s58
      %p67 = scmp.eq.s32.totalorder %s26, 0
      %p68 = por %p66, %p67
      %p69 = scmp.ne.s32.totalorder %s57, %s58
      %p70 = scmp.eq.s32.totalorder %s27, 1
      %p71 = por %p69, %p70
      %p73 = scmp.ne.s32.totalorder %s58, %s72
      %p74 = scmp.eq.s32.totalorder %s27, 0
      %p75 = por %p73, %p74
      %s77 = sadd.s32 %s76, 1
      %p80 = scmp.eq.s32.totalorder %s21, 1
      %p81 = scmp.ne.s32.totalorder %s76, %s78
      %p82 = scmp.eq.s32.totalorder %s21, 0
      %p83 = por %p81, %p82
      %p84 = scmp.ne.s32.totalorder %s76, %s78
      %p85 = scmp.eq.s32.totalorder %s26, 1
      %p86 = por %p84, %p85
      %p87 = scmp.ne.s32.totalorder %s78, %s79
      %p88 = scmp.eq.s32.totalorder %s26, 0
      %p89 = por %p87, %p88
      %p90 = scmp.ne.s32.totalorder %s78, %s79
      %p91 = scmp.eq.s32.totalorder %s27, 1
      %p92 = por %p90, %p91
      %p94 = scmp.ne.s32.totalorder %s79, %s93
      %p95 = scmp.eq.s32.totalorder %s27, 0
      %p96 = por %p94, %p95
      %s98 = sadd.s32 %s97, 1
      %p101 = scmp.eq.s32.totalorder %s21, 1
      %p102 = scmp.ne.s32.totalorder %s97, %s99
      %p103 = scmp.eq.s32.totalorder %s21, 0
      %p104 = por %p102, %p103
      %p105 = scmp.ne.s32.totalorder %s97, %s99
      %p106 = scmp.eq.s32.totalorder %s26, 1
      %p107 = por %p105, %p106
      %p108 = scmp.ne.s32.totalorder %s99, %s100
      %p109 = scmp.eq.s32.totalorder %s26, 0
      %p110 = por %p108, %p109
      %p111 = scmp.ne.s32.totalorder %s99, %s100
      %p112 = scmp.eq.s32.totalorder %s27, 1
      %p113 = por %p111, %p112
      %p115 = scmp.ne.s32.totalorder %s100, %s114
      %p116 = scmp.eq.s32.totalorder %s27, 0
      %p117 = por %p115, %p116
      %s119 = sadd.s32 %s118, 1
      %p122 = scmp.eq.s32.totalorder %s21, 1
      %p123 = scmp.ne.s32.totalorder %s118, %s120
      %p124 = scmp.eq.s32.totalorder %s21, 0
      %p125 = por %p123, %p124
      %p126 = scmp.ne.s32.totalorder %s118, %s120
      %p127 = scmp.eq.s32.totalorder %s26, 1
      %p128 = por %p126, %p127
      %p129 = scmp.ne.s32.totalorder %s120, %s121
      %p130 = scmp.eq.s32.totalorder %s26, 0
      %p131 = por %p129, %p130
      %p132 = scmp.ne.s32.totalorder %s120, %s121
      %p133 = scmp.eq.s32.totalorder %s27, 1
      %p134 = por %p132, %p133
      %p136 = scmp.ne.s32.totalorder %s121, %s135
      %p137 = scmp.eq.s32.totalorder %s27, 0
      %p138 = por %p136, %p137
      %s140 = sadd.s32 %s139, 1
      %p143 = scmp.eq.s32.totalorder %s21, 1
      %p144 = scmp.ne.s32.totalorder %s139, %s141
      %p145 = scmp.eq.s32.totalorder %s21, 0
      %p146 = por %p144, %p145
      %p147 = scmp.ne.s32.totalorder %s139, %s141
      %p148 = scmp.eq.s32.totalorder %s26, 1
      %p149 = por %p147, %p148
      %p150 = scmp.ne.s32.totalorder %s141, %s142
      %p151 = scmp.eq.s32.totalorder %s26, 0
      %p152 = por %p150, %p151
      %p153 = scmp.ne.s32.totalorder %s141, %s142
      %p154 = scmp.eq.s32.totalorder %s27, 1
      %p155 = por %p153, %p154
      %p157 = scmp.ne.s32.totalorder %s142, %s156
      %p158 = scmp.eq.s32.totalorder %s27, 0
      %p159 = por %p157, %p158
      %s161 = sadd.s32 %s160, 1
      %p164 = scmp.eq.s32.totalorder %s21, 1
      %p165 = scmp.ne.s32.totalorder %s160, %s162
      %p166 = scmp.eq.s32.totalorder %s21, 0
      %p167 = por %p165, %p166
      %p168 = scmp.ne.s32.totalorder %s160, %s162
      %p169 = scmp.eq.s32.totalorder %s26, 1
      %p170 = por %p168, %p169
      %p171 = scmp.ne.s32.totalorder %s162, %s163
      %p172 = scmp.eq.s32.totalorder %s26, 0
      %p173 = por %p171, %p172
      %p174 = scmp.ne.s32.totalorder %s162, %s163
      %p175 = scmp.eq.s32.totalorder %s27, 1
      %p176 = por %p174, %p175
      %p178 = scmp.ne.s32.totalorder %s163, %s177
      %p179 = scmp.eq.s32.totalorder %s27, 0
      %p180 = por %p178, %p179
      %s182 = sadd.s32 %s181, 1
      %p185 = scmp.eq.s32.totalorder %s21, 1
      %p186 = scmp.ne.s32.totalorder %s181, %s183
      %p187 = scmp.eq.s32.totalorder %s21, 0
      %p188 = por %p186, %p187
      %p189 = scmp.ne.s32.totalorder %s181, %s183
      %p190 = scmp.eq.s32.totalorder %s26, 1
      %p191 = por %p189, %p190
      %p192 = scmp.ne.s32.totalorder %s183, %s184
      %p193 = scmp.eq.s32.totalorder %s26, 0
      %p194 = por %p192, %p193
      %p195 = scmp.ne.s32.totalorder %s183, %s184
      %p196 = scmp.eq.s32.totalorder %s27, 1
      %p197 = por %p195, %p196
      %p199 = scmp.ne.s32.totalorder %s184, %s198
      %p200 = scmp.eq.s32.totalorder %s27, 0
      %p201 = por %p199, %p200
      %s202 = ssub.s32 %s21, %s28
      %p203 = scmp.eq.s32.totalorder %s202, 0
      %s205 = sadd.s32 %s204, 1
      %s206 = scalar_select %p203, %s204, %s205
      %p209 = pneg %p203
      %p210 = scmp.eq.s32.totalorder %s21, 1
      %p211 = por %p209, %p210
      %p212 = scmp.ne.s32.totalorder %s204, %s207
      %p213 = scmp.eq.s32.totalorder %s21, 0
      %p214 = por %p212, %p213
      %p215 = scmp.ne.s32.totalorder %s204, %s207
      %p216 = scmp.eq.s32.totalorder %s26, 1
      %p217 = por %p215, %p216
      %p218 = scmp.ne.s32.totalorder %s207, %s208
      %p219 = scmp.eq.s32.totalorder %s26, 0
      %p220 = por %p218, %p219
      %p221 = scmp.ne.s32.totalorder %s207, %s208
      %p222 = scmp.eq.s32.totalorder %s27, 1
      %p223 = por %p221, %p222
      %p225 = scmp.ne.s32.totalorder %s208, %s224
      %p226 = scmp.eq.s32.totalorder %s27, 0
      %p227 = por %p225, %p226
      %p228 = scmp.le.s32.totalorder 1, %s21
      %p229 = scmp.lt.s32.totalorder %s21, 3
      %p230 = pnand %p228, %p229
      %p231 = pneg %p230
      // Predicated region
      $region9: #{tpu_custom_call.1} parent=5 // pred_check
        _
      $region10: #{tpu_custom_call.1} parent=5 // pred_check_branch
        %233 = sbr.rel (%p230) target = $region12
      $region11: #{tpu_custom_call.1} parent=5 // pred_region
        %s234 = ssub.s32 %s21, 1
        // Predicated region
        $region13: #{tpu_custom_call.1} parent=11 // pred_check
          %p235 = pneg %p68
        $region14: #{tpu_custom_call.1} parent=11 // pred_check_branch
          %237 = sbr.rel (%p235) target = $region16
        $region15: #{tpu_custom_call.1} parent=11 // pred_region
          %239 = vsyncadd [#allocation6], 0
          %s241 = sshll.u32 %s1, 4
          %s242 = int_to_ptr.hbm [resolvable:$true] %s241
          %s243 = sshll.u32 [#allocation5], 4
          %s244 = int_to_ptr.vmem [resolvable:$true] %s243
          %246 = dma.hbm_to_vmem [thread:$0]  %s242, 16, %s244, [#allocation6]
        $region16: #{tpu_custom_call.1} parent=11 // pred_fallthru
          _
        // Predicated region
        $region17: #{tpu_custom_call.1} parent=11 // pred_check
          %p247 = pneg %p89
        $region18: #{tpu_custom_call.1} parent=11 // pred_check_branch
          %249 = sbr.rel (%p247) target = $region20
        $region19: #{tpu_custom_call.1} parent=11 // pred_region
          _
        $region20: #{tpu_custom_call.1} parent=11 // pred_fallthru
          _
        // Predicated region
        $region21: #{tpu_custom_call.1} parent=11 // pred_check
          %p250 = pneg %p110
        $region22: #{tpu_custom_call.1} parent=11 // pred_check_branch
          %252 = sbr.rel (%p250) target = $region24
        $region23: #{tpu_custom_call.1} parent=11 // pred_region
          _
        $region24: #{tpu_custom_call.1} parent=11 // pred_fallthru
          _
        // Predicated region
        $region25: #{tpu_custom_call.1} parent=11 // pred_check
          %p253 = pneg %p131
        $region26: #{tpu_custom_call.1} parent=11 // pred_check_branch
          %255 = sbr.rel (%p253) target = $region28
        $region27: #{tpu_custom_call.1} parent=11 // pred_region
          _
        $region28: #{tpu_custom_call.1} parent=11 // pred_fallthru
          _
        // Predicated region
        $region29: #{tpu_custom_call.1} parent=11 // pred_check
          %p256 = pneg %p152
        $region30: #{tpu_custom_call.1} parent=11 // pred_check_branch
          %258 = sbr.rel (%p256) target = $region32
        $region31: #{tpu_custom_call.1} parent=11 // pred_region
          _
        $region32: #{tpu_custom_call.1} parent=11 // pred_fallthru
          _
        // Predicated region
        $region33: #{tpu_custom_call.1} parent=11 // pred_check
          %p259 = pneg %p173
        $region34: #{tpu_custom_call.1} parent=11 // pred_check_branch
          %261 = sbr.rel (%p259) target = $region36
        $region35: #{tpu_custom_call.1} parent=11 // pred_region
          %263 = vsyncadd [#allocation6], 0
          %s264 = sshll.u32 %s6, 4
          %s265 = int_to_ptr.hbm [resolvable:$true] %s264
          %s266 = sshll.u32 [#allocation7], 4
          %s267 = int_to_ptr.vmem [resolvable:$true] %s266
          %272 = dma.hbm_to_vmem [thread:$0]  %s265, 512, %s267, [#allocation6], 128, 128, 8
        $region36: #{tpu_custom_call.1} parent=11 // pred_fallthru
          _
        // Predicated region
        $region37: #{tpu_custom_call.1} parent=11 // pred_check
          %p273 = pneg %p194
        $region38: #{tpu_custom_call.1} parent=11 // pred_check_branch
          %275 = sbr.rel (%p273) target = $region40
        $region39: #{tpu_custom_call.1} parent=11 // pred_region
          _
        $region40: #{tpu_custom_call.1} parent=11 // pred_fallthru
          _
      $region12: #{tpu_custom_call.1} parent=5 // pred_fallthru
        _
      %p276 = scmp.lt.s32.totalorder %s21, 2
      // Predicated region
      $region41: #{tpu_custom_call.1} parent=5 // pred_check
        %p277 = pneg %p276
      $region42: #{tpu_custom_call.1} parent=5 // pred_check_branch
        %279 = sbr.rel (%p277) target = $region44
      $region43: #{tpu_custom_call.1} parent=5 // pred_region
        // Predicated region
        $region45: #{tpu_custom_call.1} parent=43 // pred_check
          %p280 = pneg %p41
        $region46: #{tpu_custom_call.1} parent=43 // pred_check_branch
          %282 = sbr.rel (%p280) target = $region48
        $region47: #{tpu_custom_call.1} parent=43 // pred_region
          %s283 = sand.u32 %s31, 1
          %s284 = scalar_lea.sflag [#allocation3], %s283
          %s285 = sand.u32 %s31, 1
          %s286 = smul.addr %s285, 8
          %s287 = scalar_lea.vmem [#allocation2], %s286
          %289 = vsyncadd %s284, 0
          %s290 = smul.addr %s21, 8
          %s291 = scalar_lea.hbm %s0, %s290
          %s293 = sshll.u32 %s291, 4
          %s294 = int_to_ptr.hbm [resolvable:$true] %s293
          %s295 = sshll.u32 %s287, 4
          %s296 = int_to_ptr.vmem [resolvable:$true] %s295
          %298 = dma.hbm_to_vmem [thread:$0]  %s294, 128, %s296, %s284
        $region48: #{tpu_custom_call.1} parent=43 // pred_fallthru
          _
      $region44: #{tpu_custom_call.1} parent=5 // pred_fallthru
        _
      %p299 = scmp.le.s32.totalorder 1, %s21
      %p300 = scmp.lt.s32.totalorder %s21, 3
      %p301 = pnand %p299, %p300
      %p302 = pneg %p301
      // Predicated region
      $region49: #{tpu_custom_call.1} parent=5 // pred_check
        _
      $region50: #{tpu_custom_call.1} parent=5 // pred_check_branch
        %304 = sbr.rel (%p301) target = $region52
      $region51: #{tpu_custom_call.1} parent=5 // pred_region
        %s305 = ssub.s32 %s21, 1
        %s306 = sand.u32 %s34, 1
        %s307 = scalar_lea.sflag [#allocation3], %s306
        %s308 = sand.u32 %s34, 1
        %s309 = smul.addr %s308, 8
        %s310 = scalar_lea.vmem [#allocation2], %s309
        // Predicated region
        $region53: #{tpu_custom_call.1} parent=51 // pred_check
          %p311 = pneg %p47
        $region54: #{tpu_custom_call.1} parent=51 // pred_check_branch
          %313 = sbr.rel (%p311) target = $region56
        $region55: #{tpu_custom_call.1} parent=51 // pred_region
          %315 = dma.done %s307, 128
        $region56: #{tpu_custom_call.1} parent=51 // pred_fallthru
          _
        // Predicated region
        $region57: #{tpu_custom_call.1} parent=51 // pred_check
          %p316 = pneg %p68
        $region58: #{tpu_custom_call.1} parent=51 // pred_check_branch
          %318 = sbr.rel (%p316) target = $region60
        $region59: #{tpu_custom_call.1} parent=51 // pred_region
          %320 = dma.done [#allocation6], 16
        $region60: #{tpu_custom_call.1} parent=51 // pred_fallthru
          _
        // Predicated region
        $region61: #{tpu_custom_call.1} parent=51 // pred_check
          %p321 = pneg %p173
        $region62: #{tpu_custom_call.1} parent=51 // pred_check_branch
          %323 = sbr.rel (%p321) target = $region64
        $region63: #{tpu_custom_call.1} parent=51 // pred_region
          %325 = dma.done [#allocation6], 512
        $region64: #{tpu_custom_call.1} parent=51 // pred_fallthru
          _
        %s326 = sand.u32 %s34, 1
        %s327 = scalar_lea.sflag [#allocation3], %s326
        %s328 = sand.u32 %s34, 1
        %s329 = smul.addr %s328, 8
        %s330 = scalar_lea.vmem [#allocation2], %s329
        %p331 = pneg %p47
        %p332 = pneg %p44
        %p333 = pneg %p68
        %p334 = pneg %p65
        %p335 = pneg %p89
        %p336 = pneg %p86
        %p337 = pneg %p110
        %p338 = pneg %p107
        %p339 = pneg %p131
        %p340 = pneg %p128
        %p341 = pneg %p152
        %p342 = pneg %p149
        %p343 = pneg %p173
        %p344 = pneg %p170
        %p345 = pneg %p194
        %p346 = pneg %p191
        %p347 = pneg %p220
        %p348 = pneg %p217
        %s349 = sand.u32 %s207, 1
        %s350 = scalar_lea.sflag [#allocation4], %s349
        %s351 = sand.u32 %s207, 1
        %s352 = smul.addr %s351, 8
        %s353 = scalar_lea.vmem [#allocation8], %s352
        %v354 = vld [vmem:[%s310] sm:$0xff]
        %v355 = vmul.f32 %v354, %v354
        %vm356 = vcmask 261120
        %v357 = vsel %vm356, %v355, 0.0
        %358 = vadd.xlane.f32.xlu0 %v357
        %v359 = vpop.xlane.xlu0 %358
        %v360 = vrcp.pop 32.0
        %v361 = vmul.f32 32.0, %v360
        %v362 = vsub.f32 1.0, %v361
        %v363 = vmul.f32 %v360, %v362
        %v364 = vadd.f32 %v360, %v363
        %vm365 = vweird.f32 %v360
        %v366 = vsel %vm365, %v360, %v364
        %v367 = vmul.f32 %v359, %v366
        %v368 = vadd.f32 %v367, 1e-06
        %v369 = vrsqrt.pop %v368
        %v370 = vmul.f32 %v369, %v368
        %v371 = vmul.f32 %v370, %v369
        %v372 = vmul.f32 0.5, %v371
        %v373 = vsub.f32 1.5, %v372
        %v374 = vmul.f32 %v369, %v373
        %vm375 = vweird.f32 %v368
        %vm376 = vweird.f32 %v369
        %vm377 = vmor %vm375, %vm376
        %v378 = vsel %vm377, %v369, %v374
        %v379 = vmul.f32 %v354, %v378
        %v380 = vld [vmem:[#allocation5] sm:$0x1]
        %v382 = vperm.slane %v380, 0
        %v384 = vmul.f32 %v379, %v382
        %v385 = vld [vmem:[%s2] sm:$0xff]
        %v386 = vld [vmem:[%s2 + $0x8] sm:$0xff]
        %v387 = vld [vmem:[%s2 + $0x10] sm:$0xff]
        %v388 = vld [vmem:[%s2 + $0x18] sm:$0xff]
        %v390 = vsel %vm356, %v384, 0
        %392 = vmatpush.msra.mxu0 0.0
        %393 = vmatpush.msra.mxu0 0.0
        %394 = vmatpush.msra.mxu0 0.0
        %395 = vmatpush.msra.mxu0 0.0
        %396 = vmatpush.msra.mxu0 0.0
        %397 = vmatpush.msra.mxu0 0.0
        %398 = vmatpush.msra.mxu0 0.0
        %399 = vmatpush.msra.mxu0 0.0
        %400 = vmatpush.msra.mxu0 0.0
        %401 = vmatpush.msra.mxu0 0.0
        %402 = vmatpush.msra.mxu0 0.0
        %403 = vmatpush.msra.mxu0 0.0
        %404 = vmatpush.msra.mxu0 %v388
        %405 = vmatpush.msra.mxu0 %v387
        %406 = vmatpush.msra.mxu0 %v386
        %407 = vmatpush.msra.mxu0 %v385
        %408 = vmatmul.f32.gmra.mxu0 %v390
        %v409 = vpop.f32.mrf.mxu0
        %v410 = vadd.f32 0.0, %v409
        %411 = vdwg.mxu0
        %413 = vrot.lane.b32.xlu0 %v410, 120
        %v414 = vpop.permute.xlu0 %413
        %416 = vrot.lane.b32.xlu0 %v410, 112
        %v417 = vpop.permute.xlu0 %416
        %419 = vrot.lane.b32.xlu0 %v410, 104
        %v420 = vpop.permute.xlu0 %419
        %v422 = vrot.slane %v417, 4
        %vm423 = vcmask 1047556
        %v424 = vsel %vm423, %v422, %v410
        %v425 = vrot.slane %v410, 4
        %v426 = vsel %vm423, %v417, %v425
        %v428 = vunpack.c.l.s4 1983009808
        %v429 = vunpack.c.0.s8 %v428
        %v430 = vperm.slane %v424, %v429
        %v432 = vunpack.c.l.s4 1983009808
        %v433 = vunpack.c.0.s8 %v432
        %v434 = vperm.slane %v426, %v433
        %v435 = vrot.slane %v420, 4
        %v436 = vsel %vm423, %v435, %v414
        %v437 = vrot.slane %v414, 4
        %v438 = vsel %vm423, %v420, %v437
        %v440 = vunpack.c.l.s4 1983009808
        %v441 = vunpack.c.0.s8 %v440
        %v442 = vperm.slane %v436, %v441
        %v444 = vunpack.c.l.s4 1983009808
        %v445 = vunpack.c.0.s8 %v444
        %v446 = vperm.slane %v438, %v445
        %v447 = vrot.slane %v442, 4
        %v448 = vsel %vm423, %v447, %v430
        %v449 = vrot.slane %v430, 4
        %v450 = vsel %vm423, %v442, %v449
        %v452 = vunpack.c.l.s4 1934713408
        %v453 = vunpack.c.0.s8 %v452
        %v454 = vperm.slane %v448, %v453
        %v456 = vunpack.c.l.s4 1934713408
        %v457 = vunpack.c.0.s8 %v456
        %v458 = vperm.slane %v450, %v457
        %v459 = vrot.slane %v446, 4
        %v460 = vsel %vm423, %v459, %v434
        %v461 = vrot.slane %v434, 4
        %v462 = vsel %vm423, %v446, %v461
        %v464 = vunpack.c.l.s4 1934713408
        %v465 = vunpack.c.0.s8 %v464
        %v466 = vperm.slane %v460, %v465
        %v468 = vunpack.c.l.s4 1934713408
        %v469 = vunpack.c.0.s8 %v468
        %v470 = vperm.slane %v462, %v469
        %v471 = vrot.slane %v454, 4
        %v472 = vsel %vm423, 0.0, %v471
        %v473 = vrot.slane %v458, 4
        %v474 = vsel %vm423, 0.0, %v473
        %v475 = vrot.slane %v466, 4
        %v476 = vsel %vm423, 0.0, %v475
        %v477 = vrot.slane %v470, 4
        %v478 = vsel %vm423, 0.0, %v477
        %v479 = vsel %vm423, %v473, %v454
        %v481 = vunpack.c.l.s4 1983009808
        %v482 = vunpack.c.0.s8 %v481
        %v483 = vperm.slane %v479, %v482
        %v484 = vrot.slane %v474, 4
        %v485 = vsel %vm423, %v484, %v472
        %v487 = vunpack.c.l.s4 1983009808
        %v488 = vunpack.c.0.s8 %v487
        %v489 = vperm.slane %v485, %v488
        %v490 = vsel %vm423, %v477, %v466
        %v492 = vunpack.c.l.s4 1983009808
        %v493 = vunpack.c.0.s8 %v492
        %v494 = vperm.slane %v490, %v493
        %v495 = vrot.slane %v478, 4
        %v496 = vsel %vm423, %v495, %v476
        %v498 = vunpack.c.l.s4 1983009808
        %v499 = vunpack.c.0.s8 %v498
        %v500 = vperm.slane %v496, %v499
        %v501 = vrot.slane %v489, 4
        %v502 = vsel %vm423, %v501, %v483
        %v503 = vrot.slane %v483, 4
        %v504 = vsel %vm423, %v489, %v503
        %v506 = vunpack.c.l.s4 1934713408
        %v507 = vunpack.c.0.s8 %v506
        %v508 = vperm.slane %v502, %v507
        %v510 = vunpack.c.l.s4 1934713408
        %v511 = vunpack.c.0.s8 %v510
        %v512 = vperm.slane %v504, %v511
        %v513 = vrot.slane %v500, 4
        %v514 = vsel %vm423, %v513, %v494
        %v515 = vrot.slane %v494, 4
        %v516 = vsel %vm423, %v500, %v515
        %v518 = vunpack.c.l.s4 1934713408
        %v519 = vunpack.c.0.s8 %v518
        %v520 = vperm.slane %v514, %v519
        %v522 = vunpack.c.l.s4 1934713408
        %v523 = vunpack.c.0.s8 %v522
        %v524 = vperm.slane %v516, %v523
        %v525 = vrot.slane %v520, 4
        %v526 = vsel %vm423, %v525, %v508
        %v527 = vrot.slane %v508, 4
        %v528 = vsel %vm423, %v520, %v527
        %v529 = vrot.slane %v524, 4
        %v530 = vsel %vm423, %v529, %v512
        %v531 = vrot.slane %v512, 4
        %v532 = vsel %vm423, %v524, %v531
        %533 = vrot.lane.b32.xlu0 %v410, 96
        %v534 = vpop.permute.xlu0 %533
        %535 = vrot.lane.b32.xlu0 %v414, 96
        %v536 = vpop.permute.xlu0 %535
        %537 = vrot.lane.b32.xlu0 %v417, 96
        %v538 = vpop.permute.xlu0 %537
        %539 = vrot.lane.b32.xlu0 %v420, 96
        %v540 = vpop.permute.xlu0 %539
        %v545 = vrot.slane %v538, 4
        %v546 = vsel %vm423, %v545, %v534
        %v547 = vrot.slane %v534, 4
        %v548 = vsel %vm423, %v538, %v547
        %v550 = vunpack.c.l.s4 1983009808
        %v551 = vunpack.c.0.s8 %v550
        %v552 = vperm.slane %v546, %v551
        %v554 = vunpack.c.l.s4 1983009808
        %v555 = vunpack.c.0.s8 %v554
        %v556 = vperm.slane %v548, %v555
        %v557 = vrot.slane %v540, 4
        %v558 = vsel %vm423, %v557, %v536
        %v559 = vrot.slane %v536, 4
        %v560 = vsel %vm423, %v540, %v559
        %v562 = vunpack.c.l.s4 1983009808
        %v563 = vunpack.c.0.s8 %v562
        %v564 = vperm.slane %v558, %v563
        %v566 = vunpack.c.l.s4 1983009808
        %v567 = vunpack.c.0.s8 %v566
        %v568 = vperm.slane %v560, %v567
        %v569 = vrot.slane %v564, 4
        %v570 = vsel %vm423, %v569, %v552
        %v571 = vrot.slane %v552, 4
        %v572 = vsel %vm423, %v564, %v571
        %v574 = vunpack.c.l.s4 1934713408
        %v575 = vunpack.c.0.s8 %v574
        %v576 = vperm.slane %v570, %v575
        %v578 = vunpack.c.l.s4 1934713408
        %v579 = vunpack.c.0.s8 %v578
        %v580 = vperm.slane %v572, %v579
        %v581 = vrot.slane %v568, 4
        %v582 = vsel %vm423, %v581, %v556
        %v583 = vrot.slane %v556, 4
        %v584 = vsel %vm423, %v568, %v583
        %v586 = vunpack.c.l.s4 1934713408
        %v587 = vunpack.c.0.s8 %v586
        %v588 = vperm.slane %v582, %v587
        %v590 = vunpack.c.l.s4 1934713408
        %v591 = vunpack.c.0.s8 %v590
        %v592 = vperm.slane %v584, %v591
        %v593 = vrot.slane %v576, 4
        %v594 = vsel %vm423, 0.0, %v593
        %v595 = vrot.slane %v580, 4
        %v596 = vsel %vm423, 0.0, %v595
        %v597 = vrot.slane %v588, 4
        %v598 = vsel %vm423, 0.0, %v597
        %v599 = vrot.slane %v592, 4
        %v600 = vsel %vm423, 0.0, %v599
        %v601 = vsel %vm423, %v595, %v576
        %v603 = vunpack.c.l.s4 1983009808
        %v604 = vunpack.c.0.s8 %v603
        %v605 = vperm.slane %v601, %v604
        %v606 = vrot.slane %v596, 4
        %v607 = vsel %vm423, %v606, %v594
        %v609 = vunpack.c.l.s4 1983009808
        %v610 = vunpack.c.0.s8 %v609
        %v611 = vperm.slane %v607, %v610
        %v612 = vsel %vm423, %v599, %v588
        %v614 = vunpack.c.l.s4 1983009808
        %v615 = vunpack.c.0.s8 %v614
        %v616 = vperm.slane %v612, %v615
        %v617 = vrot.slane %v600, 4
        %v618 = vsel %vm423, %v617, %v598
        %v620 = vunpack.c.l.s4 1983009808
        %v621 = vunpack.c.0.s8 %v620
        %v622 = vperm.slane %v618, %v621
        %v623 = vrot.slane %v611, 4
        %v624 = vsel %vm423, %v623, %v605
        %v625 = vrot.slane %v605, 4
        %v626 = vsel %vm423, %v611, %v625
        %v628 = vunpack.c.l.s4 1934713408
        %v629 = vunpack.c.0.s8 %v628
        %v630 = vperm.slane %v624, %v629
        %v632 = vunpack.c.l.s4 1934713408
        %v633 = vunpack.c.0.s8 %v632
        %v634 = vperm.slane %v626, %v633
        %v635 = vrot.slane %v622, 4
        %v636 = vsel %vm423, %v635, %v616
        %v637 = vrot.slane %v616, 4
        %v638 = vsel %vm423, %v622, %v637
        %v640 = vunpack.c.l.s4 1934713408
        %v641 = vunpack.c.0.s8 %v640
        %v642 = vperm.slane %v636, %v641
        %v644 = vunpack.c.l.s4 1934713408
        %v645 = vunpack.c.0.s8 %v644
        %v646 = vperm.slane %v638, %v645
        %v647 = vrot.slane %v642, 4
        %v648 = vsel %vm423, %v647, %v630
        %v649 = vrot.slane %v630, 4
        %v650 = vsel %vm423, %v642, %v649
        %v651 = vrot.slane %v646, 4
        %v652 = vsel %vm423, %v651, %v634
        %v653 = vrot.slane %v634, 4
        %v654 = vsel %vm423, %v646, %v653
        %655 = vrot.lane.b32.xlu0 %v410, 64
        %v656 = vpop.permute.xlu0 %655
        %657 = vrot.lane.b32.xlu0 %v414, 64
        %v658 = vpop.permute.xlu0 %657
        %659 = vrot.lane.b32.xlu0 %v417, 64
        %v660 = vpop.permute.xlu0 %659
        %661 = vrot.lane.b32.xlu0 %v420, 64
        %v662 = vpop.permute.xlu0 %661
        %v667 = vrot.slane %v660, 4
        %v668 = vsel %vm423, %v667, %v656
        %v669 = vrot.slane %v656, 4
        %v670 = vsel %vm423, %v660, %v669
        %v672 = vunpack.c.l.s4 1983009808
        %v673 = vunpack.c.0.s8 %v672
        %v674 = vperm.slane %v668, %v673
        %v676 = vunpack.c.l.s4 1983009808
        %v677 = vunpack.c.0.s8 %v676
        %v678 = vperm.slane %v670, %v677
        %v679 = vrot.slane %v662, 4
        %v680 = vsel %vm423, %v679, %v658
        %v681 = vrot.slane %v658, 4
        %v682 = vsel %vm423, %v662, %v681
        %v684 = vunpack.c.l.s4 1983009808
        %v685 = vunpack.c.0.s8 %v684
        %v686 = vperm.slane %v680, %v685
        %v688 = vunpack.c.l.s4 1983009808
        %v689 = vunpack.c.0.s8 %v688
        %v690 = vperm.slane %v682, %v689
        %v691 = vrot.slane %v686, 4
        %v692 = vsel %vm423, %v691, %v674
        %v693 = vrot.slane %v674, 4
        %v694 = vsel %vm423, %v686, %v693
        %v696 = vunpack.c.l.s4 1934713408
        %v697 = vunpack.c.0.s8 %v696
        %v698 = vperm.slane %v692, %v697
        %v700 = vunpack.c.l.s4 1934713408
        %v701 = vunpack.c.0.s8 %v700
        %v702 = vperm.slane %v694, %v701
        %v703 = vrot.slane %v690, 4
        %v704 = vsel %vm423, %v703, %v678
        %v705 = vrot.slane %v678, 4
        %v706 = vsel %vm423, %v690, %v705
        %v708 = vunpack.c.l.s4 1934713408
        %v709 = vunpack.c.0.s8 %v708
        %v710 = vperm.slane %v704, %v709
        %v712 = vunpack.c.l.s4 1934713408
        %v713 = vunpack.c.0.s8 %v712
        %v714 = vperm.slane %v706, %v713
        %v715 = vrot.slane %v698, 4
        %v716 = vsel %vm423, 0.0, %v715
        %v717 = vrot.slane %v702, 4
        %v718 = vsel %vm423, 0.0, %v717
        %v719 = vrot.slane %v710, 4
        %v720 = vsel %vm423, 0.0, %v719
        %v721 = vrot.slane %v714, 4
        %v722 = vsel %vm423, 0.0, %v721
        %v723 = vsel %vm423, %v717, %v698
        %v725 = vunpack.c.l.s4 1983009808
        %v726 = vunpack.c.0.s8 %v725
        %v727 = vperm.slane %v723, %v726
        %v728 = vrot.slane %v718, 4
        %v729 = vsel %vm423, %v728, %v716
        %v731 = vunpack.c.l.s4 1983009808
        %v732 = vunpack.c.0.s8 %v731
        %v733 = vperm.slane %v729, %v732
        %v734 = vsel %vm423, %v721, %v710
        %v736 = vunpack.c.l.s4 1983009808
        %v737 = vunpack.c.0.s8 %v736
        %v738 = vperm.slane %v734, %v737
        %v739 = vrot.slane %v722, 4
        %v740 = vsel %vm423, %v739, %v720
        %v742 = vunpack.c.l.s4 1983009808
        %v743 = vunpack.c.0.s8 %v742
        %v744 = vperm.slane %v740, %v743
        %v745 = vrot.slane %v733, 4
        %v746 = vsel %vm423, %v745, %v727
        %v747 = vrot.slane %v727, 4
        %v748 = vsel %vm423, %v733, %v747
        %v750 = vunpack.c.l.s4 1934713408
        %v751 = vunpack.c.0.s8 %v750
        %v752 = vperm.slane %v746, %v751
        %v754 = vunpack.c.l.s4 1934713408
        %v755 = vunpack.c.0.s8 %v754
        %v756 = vperm.slane %v748, %v755
        %v757 = vrot.slane %v744, 4
        %v758 = vsel %vm423, %v757, %v738
        %v759 = vrot.slane %v738, 4
        %v760 = vsel %vm423, %v744, %v759
        %v762 = vunpack.c.l.s4 1934713408
        %v763 = vunpack.c.0.s8 %v762
        %v764 = vperm.slane %v758, %v763
        %v766 = vunpack.c.l.s4 1934713408
        %v767 = vunpack.c.0.s8 %v766
        %v768 = vperm.slane %v760, %v767
        %v769 = vrot.slane %v764, 4
        %v770 = vsel %vm423, %v769, %v752
        %v771 = vrot.slane %v752, 4
        %v772 = vsel %vm423, %v764, %v771
        %v773 = vrot.slane %v768, 4
        %v774 = vsel %vm423, %v773, %v756
        %v775 = vrot.slane %v756, 4
        %v776 = vsel %vm423, %v768, %v775
        %v777 = vld [vmem:[%s4] sm:$0xff]
        %v778 = vld [vmem:[%s4 + $0x8] sm:$0xff]
        %v779 = vld [vmem:[%s4 + $0x10] sm:$0xff]
        %v780 = vld [vmem:[%s4 + $0x18] sm:$0xff]
        %vm781 = vcmask 64512
        %v783 = vsel %vm781, %v526, 0
        %v786 = vsel %vm781, %v648, 0
        %788 = vmatpush.xpose.msra.mxu0 0.0
        %789 = vmatpush.xpose.msra.mxu0 0.0
        %790 = vmatpush.xpose.msra.mxu0 0.0
        %791 = vmatpush.xpose.msra.mxu0 0.0
        %792 = vmatpush.xpose.msra.mxu0 0.0
        %793 = vmatpush.xpose.msra.mxu0 0.0
        %794 = vmatpush.xpose.msra.mxu0 0.0
        %795 = vmatpush.xpose.msra.mxu0 0.0
        %796 = vmatpush.xpose.msra.mxu0 0.0
        %797 = vmatpush.xpose.msra.mxu0 0.0
        %798 = vmatpush.xpose.msra.mxu0 0.0
        %799 = vmatpush.xpose.msra.mxu0 0.0
        %800 = vmatpush.xpose.msra.mxu0 0.0
        %801 = vmatpush.xpose.msra.mxu0 0.0
        %802 = vmatpush.xpose.msra.mxu0 0.0
        %803 = vmatpush.xpose.msra.mxu0 %v786
        %804 = vmatmul.f32.gmra.mxu0 %v783
        %v805 = vpop.f32.mrf.mxu0
        %v806 = vadd.f32 %v777, %v805
        %807 = vdwg.mxu0
        %v809 = vsel %vm781, %v528, 0
        %v812 = vsel %vm781, %v650, 0
        %814 = vmatpush.xpose.msra.mxu0 0.0
        %815 = vmatpush.xpose.msra.mxu0 0.0
        %816 = vmatpush.xpose.msra.mxu0 0.0
        %817 = vmatpush.xpose.msra.mxu0 0.0
        %818 = vmatpush.xpose.msra.mxu0 0.0
        %819 = vmatpush.xpose.msra.mxu0 0.0
        %820 = vmatpush.xpose.msra.mxu0 0.0
        %821 = vmatpush.xpose.msra.mxu0 0.0
        %822 = vmatpush.xpose.msra.mxu0 0.0
        %823 = vmatpush.xpose.msra.mxu0 0.0
        %824 = vmatpush.xpose.msra.mxu0 0.0
        %825 = vmatpush.xpose.msra.mxu0 0.0
        %826 = vmatpush.xpose.msra.mxu0 0.0
        %827 = vmatpush.xpose.msra.mxu0 0.0
        %828 = vmatpush.xpose.msra.mxu0 0.0
        %829 = vmatpush.xpose.msra.mxu0 %v812
        %830 = vmatmul.f32.gmra.mxu0 %v809
        %v831 = vpop.f32.mrf.mxu0
        %v832 = vadd.f32 %v778, %v831
        %833 = vdwg.mxu0
        %v835 = vsel %vm781, %v530, 0
        %v838 = vsel %vm781, %v652, 0
        %840 = vmatpush.xpose.msra.mxu0 0.0
        %841 = vmatpush.xpose.msra.mxu0 0.0
        %842 = vmatpush.xpose.msra.mxu0 0.0
        %843 = vmatpush.xpose.msra.mxu0 0.0
        %844 = vmatpush.xpose.msra.mxu0 0.0
        %845 = vmatpush.xpose.msra.mxu0 0.0
        %846 = vmatpush.xpose.msra.mxu0 0.0
        %847 = vmatpush.xpose.msra.mxu0 0.0
        %848 = vmatpush.xpose.msra.mxu0 0.0
        %849 = vmatpush.xpose.msra.mxu0 0.0
        %850 = vmatpush.xpose.msra.mxu0 0.0
        %851 = vmatpush.xpose.msra.mxu0 0.0
        %852 = vmatpush.xpose.msra.mxu0 0.0
        %853 = vmatpush.xpose.msra.mxu0 0.0
        %854 = vmatpush.xpose.msra.mxu0 0.0
        %855 = vmatpush.xpose.msra.mxu0 %v838
        %856 = vmatmul.f32.gmra.mxu0 %v835
        %v857 = vpop.f32.mrf.mxu0
        %v858 = vadd.f32 %v779, %v857
        %859 = vdwg.mxu0
        %v861 = vsel %vm781, %v532, 0
        %v864 = vsel %vm781, %v654, 0
        %866 = vmatpush.xpose.msra.mxu0 0.0
        %867 = vmatpush.xpose.msra.mxu0 0.0
        %868 = vmatpush.xpose.msra.mxu0 0.0
        %869 = vmatpush.xpose.msra.mxu0 0.0
        %870 = vmatpush.xpose.msra.mxu0 0.0
        %871 = vmatpush.xpose.msra.mxu0 0.0
        %872 = vmatpush.xpose.msra.mxu0 0.0
        %873 = vmatpush.xpose.msra.mxu0 0.0
        %874 = vmatpush.xpose.msra.mxu0 0.0
        %875 = vmatpush.xpose.msra.mxu0 0.0
        %876 = vmatpush.xpose.msra.mxu0 0.0
        %877 = vmatpush.xpose.msra.mxu0 0.0
        %878 = vmatpush.xpose.msra.mxu0 0.0
        %879 = vmatpush.xpose.msra.mxu0 0.0
        %880 = vmatpush.xpose.msra.mxu0 0.0
        %881 = vmatpush.xpose.msra.mxu0 %v864
        %882 = vmatmul.f32.gmra.mxu0 %v861
        %v883 = vpop.f32.mrf.mxu0
        %v884 = vadd.f32 %v780, %v883
        %885 = vdwg.mxu0
        %v886 = vsel %vm781, %v806, -inf
        %887 = vmax.xlane.f32.xlu0 %v886
        %v888 = vpop.xlane.xlu0 %887
        %v889 = vsel %vm781, %v832, -inf
        %890 = vmax.xlane.f32.xlu0 %v889
        %v891 = vpop.xlane.xlu0 %890
        %v892 = vsel %vm781, %v858, -inf
        %893 = vmax.xlane.f32.xlu0 %v892
        %v894 = vpop.xlane.xlu0 %893
        %v895 = vsel %vm781, %v884, -inf
        %896 = vmax.xlane.f32.xlu0 %v895
        %v897 = vpop.xlane.xlu0 %896
        %v898 = vsub.f32 %v806, %v888
        %v899 = vsub.f32 %v832, %v891
        %v900 = vsub.f32 %v858, %v894
        %v901 = vsub.f32 %v884, %v897
        %v902 = vmul.f32 %v898, 1.442695
        %v903 = vpow.pop %v902
        %v904 = vmul.f32 %v899, 1.442695
        %v905 = vpow.pop %v904
        %v906 = vmul.f32 %v900, 1.442695
        %v907 = vpow.pop %v906
        %v908 = vmul.f32 %v901, 1.442695
        %v909 = vpow.pop %v908
        %v910 = vsel %vm781, %v903, 0.0
        %911 = vadd.xlane.f32.xlu0 %v910
        %v912 = vpop.xlane.xlu0 %911
        %v913 = vsel %vm781, %v905, 0.0
        %914 = vadd.xlane.f32.xlu0 %v913
        %v915 = vpop.xlane.xlu0 %914
        %v916 = vsel %vm781, %v907, 0.0
        %917 = vadd.xlane.f32.xlu0 %v916
        %v918 = vpop.xlane.xlu0 %917
        %v919 = vsel %vm781, %v909, 0.0
        %920 = vadd.xlane.f32.xlu0 %v919
        %v921 = vpop.xlane.xlu0 %920
        %v922 = vrcp.pop %v912
        %v923 = vmul.f32 %v912, %v922
        %v924 = vsub.f32 1.0, %v923
        %v925 = vmul.f32 %v922, %v924
        %v926 = vadd.f32 %v922, %v925
        %vm927 = vweird.f32 %v912
        %vm928 = vweird.f32 %v922
        %vm929 = vmor %vm927, %vm928
        %v930 = vsel %vm929, %v922, %v926
        %v931 = vand.u32 2147483647, %v912
        %vm932 = vcmp.eq.f32.partialorder %v931, 8.507059e+37
        %v933 = vand.u32 %v912, 2147483648
        %v934 = vor.u32 1.1754944e-38, %v933
        %v935 = vsel %vm932, %v934, %v930
        %v936 = vmul.f32 %v903, %v935
        %v937 = vrcp.pop %v915
        %v938 = vmul.f32 %v915, %v937
        %v939 = vsub.f32 1.0, %v938
        %v940 = vmul.f32 %v937, %v939
        %v941 = vadd.f32 %v937, %v940
        %vm942 = vweird.f32 %v915
        %vm943 = vweird.f32 %v937
        %vm944 = vmor %vm942, %vm943
        %v945 = vsel %vm944, %v937, %v941
        %v946 = vand.u32 2147483647, %v915
        %vm947 = vcmp.eq.f32.partialorder %v946, 8.507059e+37
        %v948 = vand.u32 %v915, 2147483648
        %v949 = vor.u32 1.1754944e-38, %v948
        %v950 = vsel %vm947, %v949, %v945
        %v951 = vmul.f32 %v905, %v950
        %v952 = vrcp.pop %v918
        %v953 = vmul.f32 %v918, %v952
        %v954 = vsub.f32 1.0, %v953
        %v955 = vmul.f32 %v952, %v954
        %v956 = vadd.f32 %v952, %v955
        %vm957 = vweird.f32 %v918
        %vm958 = vweird.f32 %v952
        %vm959 = vmor %vm957, %vm958
        %v960 = vsel %vm959, %v952, %v956
        %v961 = vand.u32 2147483647, %v918
        %vm962 = vcmp.eq.f32.partialorder %v961, 8.507059e+37
        %v963 = vand.u32 %v918, 2147483648
        %v964 = vor.u32 1.1754944e-38, %v963
        %v965 = vsel %vm962, %v964, %v960
        %v966 = vmul.f32 %v907, %v965
        %v967 = vrcp.pop %v921
        %v968 = vmul.f32 %v921, %v967
        %v969 = vsub.f32 1.0, %v968
        %v970 = vmul.f32 %v967, %v969
        %v971 = vadd.f32 %v967, %v970
        %vm972 = vweird.f32 %v921
        %vm973 = vweird.f32 %v967
        %vm974 = vmor %vm972, %vm973
        %v975 = vsel %vm974, %v967, %v971
        %v976 = vand.u32 2147483647, %v921
        %vm977 = vcmp.eq.f32.partialorder %v976, 8.507059e+37
        %v978 = vand.u32 %v921, 2147483648
        %v979 = vor.u32 1.1754944e-38, %v978
        %v980 = vsel %vm977, %v979, %v975
        %v981 = vmul.f32 %v909, %v980
        %v983 = vsel %vm781, %v936, 0
        %985 = vmatpush.msra.mxu0 0.0
        %986 = vmatpush.msra.mxu0 0.0
        %987 = vmatpush.msra.mxu0 0.0
        %988 = vmatpush.msra.mxu0 0.0
        %989 = vmatpush.msra.mxu0 0.0
        %990 = vmatpush.msra.mxu0 0.0
        %991 = vmatpush.msra.mxu0 0.0
        %992 = vmatpush.msra.mxu0 0.0
        %993 = vmatpush.msra.mxu0 0.0
        %994 = vmatpush.msra.mxu0 0.0
        %995 = vmatpush.msra.mxu0 0.0
        %996 = vmatpush.msra.mxu0 0.0
        %997 = vmatpush.msra.mxu0 0.0
        %998 = vmatpush.msra.mxu0 0.0
        %999 = vmatpush.msra.mxu0 0.0
        %1000 = vmatpush.msra.mxu0 %v770
        %1001 = vmatmul.f32.gmra.mxu0 %v983
        %v1002 = vpop.f32.mrf.mxu0
        %v1003 = vadd.f32 0.0, %v1002
        %1004 = vdwg.mxu0
        %v1006 = vsel %vm781, %v951, 0
        %1008 = vmatpush.msra.mxu0 0.0
        %1009 = vmatpush.msra.mxu0 0.0
        %1010 = vmatpush.msra.mxu0 0.0
        %1011 = vmatpush.msra.mxu0 0.0
        %1012 = vmatpush.msra.mxu0 0.0
        %1013 = vmatpush.msra.mxu0 0.0
        %1014 = vmatpush.msra.mxu0 0.0
        %1015 = vmatpush.msra.mxu0 0.0
        %1016 = vmatpush.msra.mxu0 0.0
        %1017 = vmatpush.msra.mxu0 0.0
        %1018 = vmatpush.msra.mxu0 0.0
        %1019 = vmatpush.msra.mxu0 0.0
        %1020 = vmatpush.msra.mxu0 0.0
        %1021 = vmatpush.msra.mxu0 0.0
        %1022 = vmatpush.msra.mxu0 0.0
        %1023 = vmatpush.msra.mxu0 %v772
        %1024 = vmatmul.f32.gmra.mxu0 %v1006
        %v1025 = vpop.f32.mrf.mxu0
        %v1026 = vadd.f32 0.0, %v1025
        %1027 = vdwg.mxu0
        %v1029 = vsel %vm781, %v966, 0
        %1031 = vmatpush.msra.mxu0 0.0
        %1032 = vmatpush.msra.mxu0 0.0
        %1033 = vmatpush.msra.mxu0 0.0
        %1034 = vmatpush.msra.mxu0 0.0
        %1035 = vmatpush.msra.mxu0 0.0
        %1036 = vmatpush.msra.mxu0 0.0
        %1037 = vmatpush.msra.mxu0 0.0
        %1038 = vmatpush.msra.mxu0 0.0
        %1039 = vmatpush.msra.mxu0 0.0
        %1040 = vmatpush.msra.mxu0 0.0
        %1041 = vmatpush.msra.mxu0 0.0
        %1042 = vmatpush.msra.mxu0 0.0
        %1043 = vmatpush.msra.mxu0 0.0
        %1044 = vmatpush.msra.mxu0 0.0
        %1045 = vmatpush.msra.mxu0 0.0
        %1046 = vmatpush.msra.mxu0 %v774
        %1047 = vmatmul.f32.gmra.mxu0 %v1029
        %v1048 = vpop.f32.mrf.mxu0
        %v1049 = vadd.f32 0.0, %v1048
        %1050 = vdwg.mxu0
        %v1052 = vsel %vm781, %v981, 0
        %1054 = vmatpush.msra.mxu0 0.0
        %1055 = vmatpush.msra.mxu0 0.0
        %1056 = vmatpush.msra.mxu0 0.0
        %1057 = vmatpush.msra.mxu0 0.0
        %1058 = vmatpush.msra.mxu0 0.0
        %1059 = vmatpush.msra.mxu0 0.0
        %1060 = vmatpush.msra.mxu0 0.0
        %1061 = vmatpush.msra.mxu0 0.0
        %1062 = vmatpush.msra.mxu0 0.0
        %1063 = vmatpush.msra.mxu0 0.0
        %1064 = vmatpush.msra.mxu0 0.0
        %1065 = vmatpush.msra.mxu0 0.0
        %1066 = vmatpush.msra.mxu0 0.0
        %1067 = vmatpush.msra.mxu0 0.0
        %1068 = vmatpush.msra.mxu0 0.0
        %1069 = vmatpush.msra.mxu0 %v776
        %1070 = vmatmul.f32.gmra.mxu0 %v1052
        %v1071 = vpop.f32.mrf.mxu0
        %v1072 = vadd.f32 0.0, %v1071
        %1073 = vdwg.mxu0
        %v1074 = vrot.slane %v1049, 4
        %v1075 = vsel %vm423, %v1074, %v1003
        %v1076 = vrot.slane %v1003, 4
        %v1077 = vsel %vm423, %v1049, %v1076
        %v1079 = vunpack.c.l.s4 1983009808
        %v1080 = vunpack.c.0.s8 %v1079
        %v1081 = vperm.slane %v1075, %v1080
        %v1083 = vunpack.c.l.s4 1983009808
        %v1084 = vunpack.c.0.s8 %v1083
        %v1085 = vperm.slane %v1077, %v1084
        %v1086 = vrot.slane %v1072, 4
        %v1087 = vsel %vm423, %v1086, %v1026
        %v1088 = vrot.slane %v1026, 4
        %v1089 = vsel %vm423, %v1072, %v1088
        %v1091 = vunpack.c.l.s4 1983009808
        %v1092 = vunpack.c.0.s8 %v1091
        %v1093 = vperm.slane %v1087, %v1092
        %v1095 = vunpack.c.l.s4 1983009808
        %v1096 = vunpack.c.0.s8 %v1095
        %v1097 = vperm.slane %v1089, %v1096
        %v1098 = vrot.slane %v1093, 4
        %v1099 = vsel %vm423, %v1098, %v1081
        %v1100 = vrot.slane %v1081, 4
        %v1101 = vsel %vm423, %v1093, %v1100
        %v1103 = vunpack.c.l.s4 1934713408
        %v1104 = vunpack.c.0.s8 %v1103
        %v1105 = vperm.slane %v1099, %v1104
        %v1107 = vunpack.c.l.s4 1934713408
        %v1108 = vunpack.c.0.s8 %v1107
        %v1109 = vperm.slane %v1101, %v1108
        %v1110 = vrot.slane %v1097, 4
        %v1111 = vsel %vm423, %v1110, %v1085
        %v1112 = vrot.slane %v1085, 4
        %v1113 = vsel %vm423, %v1097, %v1112
        %v1115 = vunpack.c.l.s4 1934713408
        %v1116 = vunpack.c.0.s8 %v1115
        %v1117 = vperm.slane %v1111, %v1116
        %v1119 = vunpack.c.l.s4 1934713408
        %v1120 = vunpack.c.0.s8 %v1119
        %v1121 = vperm.slane %v1113, %v1120
        %v1122 = vrot.slane %v1105, 4
        %v1123 = vsel %vm423, 0.0, %v1122
        %v1124 = vrot.slane %v1109, 4
        %v1125 = vsel %vm423, 0.0, %v1124
        %v1126 = vrot.slane %v1117, 4
        %v1127 = vsel %vm423, 0.0, %v1126
        %v1128 = vrot.slane %v1121, 4
        %v1129 = vsel %vm423, 0.0, %v1128
        %v1130 = vsel %vm423, %v1124, %v1105
        %v1132 = vunpack.c.l.s4 1983009808
        %v1133 = vunpack.c.0.s8 %v1132
        %v1134 = vperm.slane %v1130, %v1133
        %v1135 = vrot.slane %v1125, 4
        %v1136 = vsel %vm423, %v1135, %v1123
        %v1138 = vunpack.c.l.s4 1983009808
        %v1139 = vunpack.c.0.s8 %v1138
        %v1140 = vperm.slane %v1136, %v1139
        %v1141 = vsel %vm423, %v1128, %v1117
        %v1143 = vunpack.c.l.s4 1983009808
        %v1144 = vunpack.c.0.s8 %v1143
        %v1145 = vperm.slane %v1141, %v1144
        %v1146 = vrot.slane %v1129, 4
        %v1147 = vsel %vm423, %v1146, %v1127
        %v1149 = vunpack.c.l.s4 1983009808
        %v1150 = vunpack.c.0.s8 %v1149
        %v1151 = vperm.slane %v1147, %v1150
        %v1152 = vrot.slane %v1140, 4
        %v1153 = vsel %vm423, %v1152, %v1134
        %v1154 = vrot.slane %v1134, 4
        %v1155 = vsel %vm423, %v1140, %v1154
        %v1157 = vunpack.c.l.s4 1934713408
        %v1158 = vunpack.c.0.s8 %v1157
        %v1159 = vperm.slane %v1153, %v1158
        %v1161 = vunpack.c.l.s4 1934713408
        %v1162 = vunpack.c.0.s8 %v1161
        %v1163 = vperm.slane %v1155, %v1162
        %v1164 = vrot.slane %v1151, 4
        %v1165 = vsel %vm423, %v1164, %v1145
        %v1166 = vrot.slane %v1145, 4
        %v1167 = vsel %vm423, %v1151, %v1166
        %v1169 = vunpack.c.l.s4 1934713408
        %v1170 = vunpack.c.0.s8 %v1169
        %v1171 = vperm.slane %v1165, %v1170
        %v1173 = vunpack.c.l.s4 1934713408
        %v1174 = vunpack.c.0.s8 %v1173
        %v1175 = vperm.slane %v1167, %v1174
        %v1176 = vrot.slane %v1171, 4
        %v1177 = vsel %vm423, %v1176, %v1159
        %v1178 = vrot.slane %v1159, 4
        %v1179 = vsel %vm423, %v1171, %v1178
        %v1180 = vrot.slane %v1175, 4
        %v1181 = vsel %vm423, %v1180, %v1163
        %v1182 = vrot.slane %v1163, 4
        %v1183 = vsel %vm423, %v1175, %v1182
        %1185 = vrot.lane.b32.xlu0 %v1179, 8
        %v1186 = vpop.permute.xlu0 %1185
        %1189 = vrot.lane.b32.xlu0 %v1181, 16
        %v1190 = vpop.permute.xlu0 %1189
        %1193 = vrot.lane.b32.xlu0 %v1183, 24
        %v1194 = vpop.permute.xlu0 %1193
        %v1196 = vsel %vm781, %v1177, %v1186
        %vm1197 = vcmask 130048
        %v1198 = vsel %vm1197, %v1196, %v1190
        %vm1199 = vcmask 195584
        %v1200 = vsel %vm1199, %v1198, %v1194
        %v1201 = vld [vmem:[%s3] sm:$0xff]
        %v1202 = vld [vmem:[%s3 + $0x8] sm:$0xff]
        %v1203 = vld [vmem:[%s3 + $0x10] sm:$0xff]
        %v1204 = vld [vmem:[%s3 + $0x18] sm:$0xff]
        %v1206 = vsel %vm356, %v1200, 0
        %1208 = vmatpush.msra.mxu0 0.0
        %1209 = vmatpush.msra.mxu0 0.0
        %1210 = vmatpush.msra.mxu0 0.0
        %1211 = vmatpush.msra.mxu0 0.0
        %1212 = vmatpush.msra.mxu0 0.0
        %1213 = vmatpush.msra.mxu0 0.0
        %1214 = vmatpush.msra.mxu0 0.0
        %1215 = vmatpush.msra.mxu0 0.0
        %1216 = vmatpush.msra.mxu0 0.0
        %1217 = vmatpush.msra.mxu0 0.0
        %1218 = vmatpush.msra.mxu0 0.0
        %1219 = vmatpush.msra.mxu0 0.0
        %1220 = vmatpush.msra.mxu0 %v1204
        %1221 = vmatpush.msra.mxu0 %v1203
        %1222 = vmatpush.msra.mxu0 %v1202
        %1223 = vmatpush.msra.mxu0 %v1201
        %1224 = vmatmul.f32.gmra.mxu0 %v1206
        %v1225 = vpop.f32.mrf.mxu0
        %v1226 = vadd.f32 0.0, %v1225
        %1227 = vdwg.mxu0
        %v1228 = vadd.f32 %v354, %v1226
        %v1229 = vmul.f32 %v1228, %v1228
        %v1230 = vsel %vm356, %v1229, 0.0
        %1231 = vadd.xlane.f32.xlu0 %v1230
        %v1232 = vpop.xlane.xlu0 %1231
        %v1233 = vmul.f32 %v1232, %v366
        %v1234 = vadd.f32 %v1233, 1e-06
        %v1235 = vrsqrt.pop %v1234
        %v1236 = vmul.f32 %v1235, %v1234
        %v1237 = vmul.f32 %v1236, %v1235
        %v1238 = vmul.f32 0.5, %v1237
        %v1239 = vsub.f32 1.5, %v1238
        %v1240 = vmul.f32 %v1235, %v1239
        %vm1241 = vweird.f32 %v1234
        %vm1242 = vweird.f32 %v1235
        %vm1243 = vmor %vm1241, %vm1242
        %v1244 = vsel %vm1243, %v1235, %v1240
        %v1245 = vmul.f32 %v1228, %v1244
        %v1246 = vld [vmem:[%s5] sm:$0x1]
        %v1248 = vperm.slane %v1246, 0
        %v1250 = vmul.f32 %v1245, %v1248
        %v1251 = vld [vmem:[#allocation7] sm:$0xff]
        %v1252 = vld [vmem:[#allocation7 + $0x8] sm:$0xff]
        %v1253 = vld [vmem:[#allocation7 + $0x10] sm:$0xff]
        %v1254 = vld [vmem:[#allocation7 + $0x18] sm:$0xff]
        %v1256 = vsel %vm356, %v1250, 0
        %1258 = vmatpush.msra.mxu0 0.0
        %1259 = vmatpush.msra.mxu0 0.0
        %1260 = vmatpush.msra.mxu0 0.0
        %1261 = vmatpush.msra.mxu0 0.0
        %1262 = vmatpush.msra.mxu0 0.0
        %1263 = vmatpush.msra.mxu0 0.0
        %1264 = vmatpush.msra.mxu0 0.0
        %1265 = vmatpush.msra.mxu0 0.0
        %1266 = vmatpush.msra.mxu0 0.0
        %1267 = vmatpush.msra.mxu0 0.0
        %1268 = vmatpush.msra.mxu0 0.0
        %1269 = vmatpush.msra.mxu0 0.0
        %1270 = vmatpush.msra.mxu0 %v1254
        %1271 = vmatpush.msra.mxu0 %v1253
        %1272 = vmatpush.msra.mxu0 %v1252
        %1273 = vmatpush.msra.mxu0 %v1251
        %1274 = vmatmul.f32.gmra.mxu0 %v1256
        %v1275 = vpop.f32.mrf.mxu0
        %v1276 = vadd.f32 0.0, %v1275
        %1277 = vdwg.mxu0
        %v1278 = vmax.f32 %v1276, 0.0
        %v1279 = vld [vmem:[%s7] sm:$0xff]
        %v1280 = vld [vmem:[%s7 + $0x8] sm:$0xff]
        %v1281 = vld [vmem:[%s7 + $0x10] sm:$0xff]
        %v1282 = vld [vmem:[%s7 + $0x18] sm:$0xff]
        %v1283 = vld [vmem:[%s7 + $0x20] sm:$0xff]
        %v1284 = vld [vmem:[%s7 + $0x28] sm:$0xff]
        %v1285 = vld [vmem:[%s7 + $0x30] sm:$0xff]
        %v1286 = vld [vmem:[%s7 + $0x38] sm:$0xff]
        %vm1287 = vcmask 523264
        %v1289 = vsel %vm1287, %v1278, 0
        %1291 = vmatpush.msra.mxu0 0.0
        %1292 = vmatpush.msra.mxu0 0.0
        %1293 = vmatpush.msra.mxu0 0.0
        %1294 = vmatpush.msra.mxu0 0.0
        %1295 = vmatpush.msra.mxu0 0.0
        %1296 = vmatpush.msra.mxu0 0.0
        %1297 = vmatpush.msra.mxu0 0.0
        %1298 = vmatpush.msra.mxu0 0.0
        %1299 = vmatpush.msra.mxu0 %v1286
        %1300 = vmatpush.msra.mxu0 %v1285
        %1301 = vmatpush.msra.mxu0 %v1284
        %1302 = vmatpush.msra.mxu0 %v1283
        %1303 = vmatpush.msra.mxu0 %v1282
        %1304 = vmatpush.msra.mxu0 %v1281
        %1305 = vmatpush.msra.mxu0 %v1280
        %1306 = vmatpush.msra.mxu0 %v1279
        %1307 = vmatmul.f32.gmra.mxu0 %v1289
        %v1308 = vpop.f32.mrf.mxu0
        %v1309 = vadd.f32 0.0, %v1308
        %1310 = vdwg.mxu0
        %v1311 = vadd.f32 %v1228, %v1309
        %1312 = vst.msk [vmem:[%s353] sm:$0xff] %vm356, %v1311
        %s1313 = sand.u32 %s207, 1
        %s1314 = scalar_lea.sflag [#allocation4], %s1313
        %s1315 = sand.u32 %s207, 1
        %s1316 = smul.addr %s1315, 8
        %s1317 = scalar_lea.vmem [#allocation8], %s1316
        // Predicated region
        $region65: #{tpu_custom_call.1} parent=51 // pred_check
          %p1318 = pneg %p217
        $region66: #{tpu_custom_call.1} parent=51 // pred_check_branch
          %1320 = sbr.rel (%p1318) target = $region68
        $region67: #{tpu_custom_call.1} parent=51 // pred_region
          %1322 = vsyncadd %s1314, 0
          %s1323 = smul.addr %s26, 8
          %s1324 = scalar_lea.hbm %s8, %s1323
          %s1326 = sshll.u32 %s1317, 4
          %s1327 = int_to_ptr.vmem [resolvable:$true] %s1326
          %s1328 = sshll.u32 %s1324, 4
          %s1329 = int_to_ptr.hbm [resolvable:$true] %s1328
          %1331 = dma.vmem_to_hbm [thread:$0]  %s1327, 128, %s1329, %s1314
        $region68: #{tpu_custom_call.1} parent=51 // pred_fallthru
          _
      $region52: #{tpu_custom_call.1} parent=5 // pred_fallthru
        _
      %p1332 = scmp.le.s32.totalorder 2, %s21
      // Predicated region
      $region69: #{tpu_custom_call.1} parent=5 // pred_check
        %p1333 = pneg %p1332
      $region70: #{tpu_custom_call.1} parent=5 // pred_check_branch
        %1335 = sbr.rel (%p1333) target = $region72
      $region71: #{tpu_custom_call.1} parent=5 // pred_region
        %s1336 = ssub.s32 %s21, 2
        // Predicated region
        $region73: #{tpu_custom_call.1} parent=71 // pred_check
          %p1337 = pneg %p223
        $region74: #{tpu_custom_call.1} parent=71 // pred_check_branch
          %1339 = sbr.rel (%p1337) target = $region76
        $region75: #{tpu_custom_call.1} parent=71 // pred_region
          %s1340 = sand.u32 %s208, 1
          %s1341 = scalar_lea.sflag [#allocation4], %s1340
          %s1342 = sand.u32 %s208, 1
          %s1343 = smul.addr %s1342, 8
          %s1344 = scalar_lea.vmem [#allocation8], %s1343
          %1346 = dma.done %s1341, 128
        $region76: #{tpu_custom_call.1} parent=71 // pred_fallthru
          _
      $region72: #{tpu_custom_call.1} parent=5 // pred_fallthru
        _
    $region6: #{tpu_custom_call.1} parent=1 // loop_footer
      %s25 = sadd.s32 1, %s21
    $region7: #{tpu_custom_call.1} parent=1 // loop_footer_branch
      %20 = sbr.rel target = $region3
    $region8: #{tpu_custom_call.1} parent=1 // loop_exit
      _
    %1347 = vsyncpa [#allocation3], 1
    %s1348 = scalar_lea.sflag [#allocation3], 1
    %1349 = vsyncpa %s1348, 1
    %1350 = vsyncpa [#allocation6], 1
    %1351 = vsyncpa [#allocation4], 1
    %s1352 = scalar_lea.sflag [#allocation4], 1
    %1353 = vsyncpa %s1352, 1

</llo_original>
